<compile_context>
chip_gen: v6e
topology: v6e:2x2x1
jax: 0.10.0
libtpu: 0.0.40
codegen_flags: <defaults>
</compile_context>

<pallas_src>
import functools

import jax
import jax.numpy as jnp
from jax.experimental import pallas as pl
from jax.experimental.pallas import tpu as pltpu


def _round_up(x, m):
    return ((x + m - 1) // m) * m


def _lstm_fc_logsoftmax_kernel(
    tok_ref,    # (T*Bp, 1) int32  time-major token ids (pad rows hold 0)
    h0_ref,     # (Bp, H)   f32    initial hidden state (batch padded to Bp)
    c0_ref,     # (Bp, H)   f32    initial cell state
    emb_ref,    # (V, E)    bf16   embedding table
    wih_ref,    # (E, 4H)   bf16   input->gates weights, gate order [i,f,o,g]
    b_ref,      # (1, 4H)   f32    combined bias b_ih + b_hh, gate order [i,f,o,g]
    whh_ref,    # (H, 4H)   bf16   hidden->gates weights, gate order [i,f,o,g]
    wfc_ref,    # (H, Vp)   bf16   fc weights (vocab padded to Vp)
    bfc_ref,    # (1, Vp)   f32    fc bias (pad columns hold -1e30)
    out_ref,    # (T*Bp, Vp) f32   log-probs, time-major rows
    hout_ref,   # (Bp, H)   f32    final hidden state
    cout_ref,   # (Bp, H)   f32    final cell state
    gtab_ref,   # scratch (V, 4H)     f32  per-token gate-input table
    gx_ref,     # scratch (T*Bp, 4H)  f32  hoisted x@W_ih + b for all timesteps
    hall_ref,   # scratch (T*Bp, H)   f32  all hidden states
    *,
    seq_len,
    batch_p,
    hidden,
    vocab,
):
    H = hidden
    TB = seq_len * batch_p

    # ---- hoisted input projection, fused with the embedding gather -------------------
    # G[v] = emb[v] @ W_ih + b  (one MXU matmul, independent of T and B)
    gtab_ref[...] = (
        jnp.dot(emb_ref[...], wih_ref[...], preferred_element_type=jnp.float32)
        + b_ref[...]
    )
    # gx[r] = G[token[r]] : the gather runs on the MXU as a one-hot matmul (no per-row
    # dynamic indexing); exact, since each one-hot row contains a single 1.
    onehot = jnp.where(
        tok_ref[...] == jax.lax.broadcasted_iota(jnp.int32, (TB, vocab), 1),
        1.0, 0.0)                                                  # (TB, V) f32
    gx_ref[...] = jnp.dot(onehot, gtab_ref[...],
                          preferred_element_type=jnp.float32)      # (TB, 4H)

    # ---- serial LSTM recurrence (the only truly sequential part) ---------------------
    whh = whh_ref[...]                                             # (H, 4H) bf16
    h = h0_ref[...]                                                # (Bp, H) f32
    c = c0_ref[...]
    for t in range(seq_len):
        g = gx_ref[t * batch_p:(t + 1) * batch_p, :] + jnp.dot(
            h.astype(jnp.bfloat16), whh, preferred_element_type=jnp.float32)
        s = jax.nn.sigmoid(g[:, :3 * H])                           # [i | f | o], one pass
        gg = jnp.tanh(g[:, 3 * H:])                                # g-gate
        c = s[:, H:2 * H] * c + s[:, :H] * gg
        h = s[:, 2 * H:3 * H] * jnp.tanh(c)
        hall_ref[t * batch_p:(t + 1) * batch_p, :] = h

    hout_ref[...] = h.astype(hout_ref.dtype)
    cout_ref[...] = c.astype(cout_ref.dtype)

    # ---- fc + log-softmax, batched over all timesteps (lane-dense output slab) -------
    # Padded vocab columns carry a -1e30 bias so exp underflows to 0 exactly.
    logits = (
        jnp.dot(hall_ref[...].astype(jnp.bfloat16), wfc_ref[...],
                preferred_element_type=jnp.float32)
        + bfc_ref[...]
    )                                                              # (TB, Vp)
    m = jnp.max(logits, axis=-1, keepdims=True)
    z = logits - m
    lse = jnp.log(jnp.sum(jnp.exp(z), axis=-1, keepdims=True))
    out_ref[...] = (z - lse).astype(out_ref.dtype)


def _reorder_gates(w):
    """PyTorch gate order [i, f, g, o] -> kernel order [i, f, o, g] along last dim."""
    Hh = w.shape[-1] // 4
    return jnp.concatenate(
        [w[..., :2 * Hh], w[..., 3 * Hh:], w[..., 2 * Hh:3 * Hh]], axis=-1)


@jax.jit
def name_generator_forward(tokens, hiddens, params):
    """Mirrors NameGeneratorNet.forward.

    tokens:  (B, T) int32 token ids
    hiddens: tuple (h0, c0), each (1, B, H)
    params:  dict with embedding / lstm / fc weights (PyTorch gate order, pre-transposed)
    returns: (log_probs (B, T, V), (h_n (1, B, H), c_n (1, B, H)))
    """
    emb_table = params["embedding"]            # (V, E)
    w_ih = params["w_ih"]                      # (E, 4H)
    w_hh = params["w_hh"]                      # (H, 4H)
    b = params["b"]                            # (1, 4H)
    w_fc = params["w_fc"]                      # (H, Vout)
    b_fc = params["b_fc"]                      # (1, Vout)

    B, T = tokens.shape
    V, E = emb_table.shape
    H = w_hh.shape[0]
    Vout = w_fc.shape[1]

    Bp = _round_up(max(B, 8), 8)               # f32 sublane minimum
    Vp = _round_up(Vout, 128)                  # lane-dense output store

    # time-major token column (pad rows use token 0; they are sliced off below)
    tok_t = tokens.T.astype(jnp.int32)                              # (T, B)
    if Bp > B:
        tok_t = jnp.pad(tok_t, ((0, 0), (0, Bp - B)))
    tok_col = tok_t.reshape(T * Bp, 1)

    h0 = hiddens[0][0]                                              # (B, H)
    c0 = hiddens[1][0]
    if Bp > B:
        h0 = jnp.pad(h0, ((0, Bp - B), (0, 0)))
        c0 = jnp.pad(c0, ((0, Bp - B), (0, 0)))

    # one-time gate repack [i,f,g,o] -> [i,f,o,g]; bf16 MXU operands (f32 accumulation)
    w_ih_k = _reorder_gates(w_ih).astype(jnp.bfloat16)
    w_hh_k = _reorder_gates(w_hh).astype(jnp.bfloat16)
    b_k = _reorder_gates(b)
    emb_k = emb_table.astype(jnp.bfloat16)

    w_fc_k = w_fc
    b_fc_k = b_fc
    if Vp > Vout:
        w_fc_k = jnp.pad(w_fc_k, ((0, 0), (0, Vp - Vout)))
        b_fc_k = jnp.pad(b_fc_k, ((0, 0), (0, Vp - Vout)), constant_values=-1e30)
    w_fc_k = w_fc_k.astype(jnp.bfloat16)

    vmem = pl.BlockSpec(memory_space=pltpu.MemorySpace.VMEM)
    kernel = functools.partial(_lstm_fc_logsoftmax_kernel,
                               seq_len=T, batch_p=Bp, hidden=H, vocab=V)

    out2d, h_n, c_n = pl.pallas_call(
        kernel,
        out_shape=(
            jax.ShapeDtypeStruct((T * Bp, Vp), jnp.float32),
            jax.ShapeDtypeStruct((Bp, H), jnp.float32),
            jax.ShapeDtypeStruct((Bp, H), jnp.float32),
        ),
        in_specs=[vmem] * 9,
        out_specs=(vmem, vmem, vmem),
        scratch_shapes=[
            pltpu.VMEM((V, 4 * H), jnp.float32),          # gtab: emb@W_ih + b
            pltpu.VMEM((T * Bp, 4 * H), jnp.float32),     # gx:   gathered gate inputs
            pltpu.VMEM((T * Bp, H), jnp.float32),         # h_all
        ],
    )(tok_col, h0, c0, emb_k, w_ih_k, b_k, w_hh_k, w_fc_k, b_fc_k)

    # slice off batch/vocab pads, back to PyTorch's batch_first layout
    log_probs = out2d.reshape(T, Bp, Vp)[:, :B, :Vout].transpose(1, 0, 2)   # (B, T, V)
    return log_probs, (h_n[:B][None], c_n[:B][None])


def _reference_forward(tokens, hiddens, params):
    """Pure-JAX f32 reference of the same forward pass (for correctness check)."""
    x = jnp.take(params["embedding"], tokens, axis=0)            # (B, T, E)
    h = hiddens[0][0]
    c = hiddens[1][0]
    H = h.shape[-1]

    def step(carry, x_t):
        h, c = carry
        gates = x_t @ params["w_ih"] + h @ params["w_hh"] + params["b"]
        i_g = jax.nn.sigmoid(gates[:, 0 * H:1 * H])
        f_g = jax.nn.sigmoid(gates[:, 1 * H:2 * H])
        g_g = jnp.tanh(gates[:, 2 * H:3 * H])
        o_g = jax.nn.sigmoid(gates[:, 3 * H:4 * H])
        c_new = f_g * c + i_g * g_g
        h_new = o_g * jnp.tanh(c_new)
        return (h_new, c_new), h_new

    (h_n, c_n), hs = jax.lax.scan(step, (h, c), jnp.transpose(x, (1, 0, 2)))
    outs = jnp.transpose(hs, (1, 0, 2)) @ params["w_fc"] + params["b_fc"]
    log_probs = jax.nn.log_softmax(outs, axis=2)
    return log_probs, (h_n[None], c_n[None])


def _init_params(key, vocab_size, embedding_size, hidden_size, output_size):
    ks = jax.random.split(key, 7)
    scale = 1.0 / jnp.sqrt(hidden_size)
    return {
        "embedding": jax.random.normal(ks[0], (vocab_size, embedding_size), jnp.float32),
        # stored pre-transposed relative to PyTorch's (4H, E)/(4H, H) layout,
        # PyTorch gate order [i, f, g, o]
        "w_ih": jax.random.uniform(ks[1], (embedding_size, 4 * hidden_size), jnp.float32,
                                   -scale, scale),
        "w_hh": jax.random.uniform(ks[2], (hidden_size, 4 * hidden_size), jnp.float32,
                                   -scale, scale),
        # b = b_ih + b_hh combined
        "b": (jax.random.uniform(ks[3], (1, 4 * hidden_size), jnp.float32, -scale, scale)
              + jax.random.uniform(ks[4], (1, 4 * hidden_size), jnp.float32, -scale, scale)),
        "w_fc": jax.random.uniform(ks[5], (hidden_size, output_size), jnp.float32,
                                   -scale, scale),
        "b_fc": jax.random.uniform(ks[6], (1, output_size), jnp.float32, -scale, scale),
    }


if __name__ == "__main__":
    # Small, module-consistent shapes.
    VOCAB = 64          # input_size
    EMB = 128           # embedding_size (module default)
    HIDDEN = 128        # hidden_size
    OUT = 64            # output_size
    BATCH = 2
    SEQ = 8

    key = jax.random.PRNGKey(0)
    k_params, k_tokens = jax.random.split(key)

    params = _init_params(k_params, VOCAB, EMB, HIDDEN, OUT)
    tokens = jax.random.randint(k_tokens, (BATCH, SEQ), 0, VOCAB, dtype=jnp.int32)

    # init_hiddens equivalent: zeros of shape (num_layers=1, B, H)
    hiddens = (
        jnp.zeros((1, BATCH, HIDDEN), jnp.float32),
        jnp.zeros((1, BATCH, HIDDEN), jnp.float32),
    )

    log_probs, (h_n, c_n) = name_generator_forward(tokens, hiddens, params)
    jax.block_until_ready((log_probs, h_n, c_n))

    # Sanity check against a pure-JAX f32 reference.  The kernel uses bf16 MXU operands
    # (f32 accumulation) through an 8-step recurrence, so the tolerance is widened
    # accordingly relative to the all-f32 reference.
    ref_lp, (ref_h, ref_c) = _reference_forward(tokens, hiddens, params)
    assert log_probs.shape == (BATCH, SEQ, OUT)
    assert h_n.shape == (1, BATCH, HIDDEN) and c_n.shape == (1, BATCH, HIDDEN)
    assert jnp.allclose(log_probs, ref_lp, atol=2e-2, rtol=1e-2)
    assert jnp.allclose(h_n, ref_h, atol=2e-2, rtol=1e-2)
    assert jnp.allclose(c_n, ref_c, atol=2e-2, rtol=1e-2)

    print("KERNEL_OK")
</pallas_src>

<mosaic_0001>
module attributes {stable_mosaic.version = 11 : i64} {
  func.func @_lstm_fc_logsoftmax_kernel(%arg0: memref<64x1xi32, #tpu.memory_space<vmem>>, %arg1: memref<8x128xf32, #tpu.memory_space<vmem>>, %arg2: memref<8x128xf32, #tpu.memory_space<vmem>>, %arg3: memref<64x128xbf16, #tpu.memory_space<vmem>>, %arg4: memref<128x512xbf16, #tpu.memory_space<vmem>>, %arg5: memref<1x512xf32, #tpu.memory_space<vmem>>, %arg6: memref<128x512xbf16, #tpu.memory_space<vmem>>, %arg7: memref<128x128xbf16, #tpu.memory_space<vmem>>, %arg8: memref<1x128xf32, #tpu.memory_space<vmem>>, %arg9: memref<64x128xf32, #tpu.memory_space<vmem>>, %arg10: memref<8x128xf32, #tpu.memory_space<vmem>>, %arg11: memref<8x128xf32, #tpu.memory_space<vmem>>, %arg12: memref<64x512xf32, #tpu.memory_space<vmem>>, %arg13: memref<64x512xf32, #tpu.memory_space<vmem>>, %arg14: memref<64x128xf32, #tpu.memory_space<vmem>>) attributes {dimension_semantics = [], scalar_prefetch = 0 : i64, scratch_operands = 3 : i64, tpu.core_type = #tpu.core_type<tc>} {
    %c0 = arith.constant 0 : index
    %c0_0 = arith.constant 0 : index
    %0 = vector.load %arg3[%c0, %c0_0] : memref<64x128xbf16, #tpu.memory_space<vmem>>, vector<64x128xbf16>
    %c0_1 = arith.constant 0 : index
    %c0_2 = arith.constant 0 : index
    %1 = vector.load %arg4[%c0_1, %c0_2] : memref<128x512xbf16, #tpu.memory_space<vmem>>, vector<128x512xbf16>
    %cst = arith.constant dense<0.000000e+00> : vector<64x512xf32>
    %2 = tpu.matmul %0, %1, %cst {dimension_numbers = #tpu.dot_dimension_numbers<[1], [0], [0], [1], [0, 0, 1, 1], [], []>} : vector<64x128xbf16>, vector<128x512xbf16>, vector<64x512xf32> -> vector<64x512xf32>
    %c0_3 = arith.constant 0 : index
    %c0_4 = arith.constant 0 : index
    %3 = vector.load %arg5[%c0_3, %c0_4] : memref<1x512xf32, #tpu.memory_space<vmem>>, vector<1x512xf32>
    %4 = vector.broadcast %3 : vector<1x512xf32> to vector<64x512xf32>
    %5 = arith.addf %2, %4 : vector<64x512xf32>
    %c0_5 = arith.constant 0 : index
    %c0_6 = arith.constant 0 : index
    %6 = vector.load %arg12[%c0_5, %c0_6] : memref<64x512xf32, #tpu.memory_space<vmem>>, vector<64x512xf32>
    tpu.vector_store %arg12[%c0_5, %c0_6], %5 {strides = array<i32>} : memref<64x512xf32, #tpu.memory_space<vmem>>, vector<64x512xf32>,
    %c0_7 = arith.constant 0 : index
    %c0_8 = arith.constant 0 : index
    %7 = vector.load %arg0[%c0_7, %c0_8] : memref<64x1xi32, #tpu.memory_space<vmem>>, vector<64x1xi32>
    %8 = tpu.iota {dimensions = array<i32: 1>} : vector<64x64xi32>
    %9 = vector.broadcast %7 : vector<64x1xi32> to vector<64x64xi32>
    %10 = arith.cmpi eq, %9, %8 : vector<64x64xi32>
    %cst_9 = arith.constant 1.000000e+00 : f32
    %cst_10 = arith.constant 0.000000e+00 : f32
    %11 = vector.broadcast %cst_9 : f32 to vector<64x64xf32>
    %12 = vector.broadcast %cst_10 : f32 to vector<64x64xf32>
    %13 = arith.select %10, %11, %12 : vector<64x64xi1>, vector<64x64xf32>
    %c0_11 = arith.constant 0 : index
    %c0_12 = arith.constant 0 : index
    %14 = vector.load %arg12[%c0_11, %c0_12] : memref<64x512xf32, #tpu.memory_space<vmem>>, vector<64x512xf32>
    %cst_13 = arith.constant dense<0.000000e+00> : vector<64x512xf32>
    %15 = tpu.matmul %13, %14, %cst_13 {dimension_numbers = #tpu.dot_dimension_numbers<[1], [0], [0], [1], [0, 0, 1, 1], [], []>} : vector<64x64xf32>, vector<64x512xf32>, vector<64x512xf32> -> vector<64x512xf32>
    %c0_14 = arith.constant 0 : index
    %c0_15 = arith.constant 0 : index
    %16 = vector.load %arg13[%c0_14, %c0_15] : memref<64x512xf32, #tpu.memory_space<vmem>>, vector<64x512xf32>
    tpu.vector_store %arg13[%c0_14, %c0_15], %15 {strides = array<i32>} : memref<64x512xf32, #tpu.memory_space<vmem>>, vector<64x512xf32>,
    %c0_16 = arith.constant 0 : index
    %c0_17 = arith.constant 0 : index
    %17 = vector.load %arg6[%c0_16, %c0_17] : memref<128x512xbf16, #tpu.memory_space<vmem>>, vector<128x512xbf16>
    %c0_18 = arith.constant 0 : index
    %c0_19 = arith.constant 0 : index
    %18 = vector.load %arg1[%c0_18, %c0_19] : memref<8x128xf32, #tpu.memory_space<vmem>>, vector<8x128xf32>
    %c0_20 = arith.constant 0 : index
    %c0_21 = arith.constant 0 : index
    %19 = vector.load %arg2[%c0_20, %c0_21] : memref<8x128xf32, #tpu.memory_space<vmem>>, vector<8x128xf32>
    %c0_22 = arith.constant 0 : index
    %c0_23 = arith.constant 0 : index
    %20 = vector.load %arg13[%c0_22, %c0_23] : memref<64x512xf32, #tpu.memory_space<vmem>>, vector<8x512xf32>
    %21 = arith.truncf %18 : vector<8x128xf32> to vector<8x128xbf16>
    %cst_24 = arith.constant dense<0.000000e+00> : vector<8x512xf32>
    %22 = tpu.matmul %21, %17, %cst_24 {dimension_numbers = #tpu.dot_dimension_numbers<[1], [0], [0], [1], [0, 0, 1, 1], [], []>} : vector<8x128xbf16>, vector<128x512xbf16>, vector<8x512xf32> -> vector<8x512xf32>
    %23 = arith.addf %20, %22 : vector<8x512xf32>
    %24 = vector.extract_strided_slice %23 {offsets = [0, 0], sizes = [8, 384], strides = [1, 1]} : vector<8x512xf32> to vector<8x384xf32>
    %25 = arith.negf %24 : vector<8x384xf32>
    %26 = math.exp %25 : vector<8x384xf32>
    %cst_25 = arith.constant 1.000000e+00 : f32
    %27 = vector.broadcast %cst_25 : f32 to vector<8x384xf32>
    %28 = arith.addf %27, %26 : vector<8x384xf32>
    %29 = arith.divf %27, %28 : vector<8x384xf32>
    %30 = vector.extract_strided_slice %23 {offsets = [0, 384], sizes = [8, 128], strides = [1, 1]} : vector<8x512xf32> to vector<8x128xf32>
    %31 = math.tanh %30 : vector<8x128xf32>
    %32 = vector.extract_strided_slice %29 {offsets = [0, 128], sizes = [8, 128], strides = [1, 1]} : vector<8x384xf32> to vector<8x128xf32>
    %33 = arith.mulf %32, %19 : vector<8x128xf32>
    %34 = vector.extract_strided_slice %29 {offsets = [0, 0], sizes = [8, 128], strides = [1, 1]} : vector<8x384xf32> to vector<8x128xf32>
    %35 = arith.mulf %34, %31 : vector<8x128xf32>
    %36 = arith.addf %33, %35 : vector<8x128xf32>
    %37 = vector.extract_strided_slice %29 {offsets = [0, 256], sizes = [8, 128], strides = [1, 1]} : vector<8x384xf32> to vector<8x128xf32>
    %38 = math.tanh %36 : vector<8x128xf32>
    %39 = arith.mulf %37, %38 : vector<8x128xf32>
    %c0_26 = arith.constant 0 : index
    %c0_27 = arith.constant 0 : index
    %40 = vector.load %arg14[%c0_26, %c0_27] : memref<64x128xf32, #tpu.memory_space<vmem>>, vector<8x128xf32>
    tpu.vector_store %arg14[%c0_26, %c0_27], %39 {strides = array<i32>} : memref<64x128xf32, #tpu.memory_space<vmem>>, vector<8x128xf32>,
    %c8 = arith.constant 8 : index
    %c0_28 = arith.constant 0 : index
    %41 = vector.load %arg13[%c8, %c0_28] : memref<64x512xf32, #tpu.memory_space<vmem>>, vector<8x512xf32>
    %42 = arith.truncf %39 : vector<8x128xf32> to vector<8x128xbf16>
    %cst_29 = arith.constant dense<0.000000e+00> : vector<8x512xf32>
    %43 = tpu.matmul %42, %17, %cst_29 {dimension_numbers = #tpu.dot_dimension_numbers<[1], [0], [0], [1], [0, 0, 1, 1], [], []>} : vector<8x128xbf16>, vector<128x512xbf16>, vector<8x512xf32> -> vector<8x512xf32>
    %44 = arith.addf %41, %43 : vector<8x512xf32>
    %45 = vector.extract_strided_slice %44 {offsets = [0, 0], sizes = [8, 384], strides = [1, 1]} : vector<8x512xf32> to vector<8x384xf32>
    %46 = arith.negf %45 : vector<8x384xf32>
    %47 = math.exp %46 : vector<8x384xf32>
    %cst_30 = arith.constant 1.000000e+00 : f32
    %48 = vector.broadcast %cst_30 : f32 to vector<8x384xf32>
    %49 = arith.addf %48, %47 : vector<8x384xf32>
    %50 = arith.divf %48, %49 : vector<8x384xf32>
    %51 = vector.extract_strided_slice %44 {offsets = [0, 384], sizes = [8, 128], strides = [1, 1]} : vector<8x512xf32> to vector<8x128xf32>
    %52 = math.tanh %51 : vector<8x128xf32>
    %53 = vector.extract_strided_slice %50 {offsets = [0, 128], sizes = [8, 128], strides = [1, 1]} : vector<8x384xf32> to vector<8x128xf32>
    %54 = arith.mulf %53, %36 : vector<8x128xf32>
    %55 = vector.extract_strided_slice %50 {offsets = [0, 0], sizes = [8, 128], strides = [1, 1]} : vector<8x384xf32> to vector<8x128xf32>
    %56 = arith.mulf %55, %52 : vector<8x128xf32>
    %57 = arith.addf %54, %56 : vector<8x128xf32>
    %58 = vector.extract_strided_slice %50 {offsets = [0, 256], sizes = [8, 128], strides = [1, 1]} : vector<8x384xf32> to vector<8x128xf32>
    %59 = math.tanh %57 : vector<8x128xf32>
    %60 = arith.mulf %58, %59 : vector<8x128xf32>
    %c8_31 = arith.constant 8 : index
    %c0_32 = arith.constant 0 : index
    %61 = vector.load %arg14[%c8_31, %c0_32] : memref<64x128xf32, #tpu.memory_space<vmem>>, vector<8x128xf32>
    tpu.vector_store %arg14[%c8_31, %c0_32], %60 {strides = array<i32>} : memref<64x128xf32, #tpu.memory_space<vmem>>, vector<8x128xf32>,
    %c16 = arith.constant 16 : index
    %c0_33 = arith.constant 0 : index
    %62 = vector.load %arg13[%c16, %c0_33] : memref<64x512xf32, #tpu.memory_space<vmem>>, vector<8x512xf32>
    %63 = arith.truncf %60 : vector<8x128xf32> to vector<8x128xbf16>
    %cst_34 = arith.constant dense<0.000000e+00> : vector<8x512xf32>
    %64 = tpu.matmul %63, %17, %cst_34 {dimension_numbers = #tpu.dot_dimension_numbers<[1], [0], [0], [1], [0, 0, 1, 1], [], []>} : vector<8x128xbf16>, vector<128x512xbf16>, vector<8x512xf32> -> vector<8x512xf32>
    %65 = arith.addf %62, %64 : vector<8x512xf32>
    %66 = vector.extract_strided_slice %65 {offsets = [0, 0], sizes = [8, 384], strides = [1, 1]} : vector<8x512xf32> to vector<8x384xf32>
    %67 = arith.negf %66 : vector<8x384xf32>
    %68 = math.exp %67 : vector<8x384xf32>
    %cst_35 = arith.constant 1.000000e+00 : f32
    %69 = vector.broadcast %cst_35 : f32 to vector<8x384xf32>
    %70 = arith.addf %69, %68 : vector<8x384xf32>
    %71 = arith.divf %69, %70 : vector<8x384xf32>
    %72 = vector.extract_strided_slice %65 {offsets = [0, 384], sizes = [8, 128], strides = [1, 1]} : vector<8x512xf32> to vector<8x128xf32>
    %73 = math.tanh %72 : vector<8x128xf32>
    %74 = vector.extract_strided_slice %71 {offsets = [0, 128], sizes = [8, 128], strides = [1, 1]} : vector<8x384xf32> to vector<8x128xf32>
    %75 = arith.mulf %74, %57 : vector<8x128xf32>
    %76 = vector.extract_strided_slice %71 {offsets = [0, 0], sizes = [8, 128], strides = [1, 1]} : vector<8x384xf32> to vector<8x128xf32>
    %77 = arith.mulf %76, %73 : vector<8x128xf32>
    %78 = arith.addf %75, %77 : vector<8x128xf32>
    %79 = vector.extract_strided_slice %71 {offsets = [0, 256], sizes = [8, 128], strides = [1, 1]} : vector<8x384xf32> to vector<8x128xf32>
    %80 = math.tanh %78 : vector<8x128xf32>
    %81 = arith.mulf %79, %80 : vector<8x128xf32>
    %c16_36 = arith.constant 16 : index
    %c0_37 = arith.constant 0 : index
    %82 = vector.load %arg14[%c16_36, %c0_37] : memref<64x128xf32, #tpu.memory_space<vmem>>, vector<8x128xf32>
    tpu.vector_store %arg14[%c16_36, %c0_37], %81 {strides = array<i32>} : memref<64x128xf32, #tpu.memory_space<vmem>>, vector<8x128xf32>,
    %c24 = arith.constant 24 : index
    %c0_38 = arith.constant 0 : index
    %83 = vector.load %arg13[%c24, %c0_38] : memref<64x512xf32, #tpu.memory_space<vmem>>, vector<8x512xf32>
    %84 = arith.truncf %81 : vector<8x128xf32> to vector<8x128xbf16>
    %cst_39 = arith.constant dense<0.000000e+00> : vector<8x512xf32>
    %85 = tpu.matmul %84, %17, %cst_39 {dimension_numbers = #tpu.dot_dimension_numbers<[1], [0], [0], [1], [0, 0, 1, 1], [], []>} : vector<8x128xbf16>, vector<128x512xbf16>, vector<8x512xf32> -> vector<8x512xf32>
    %86 = arith.addf %83, %85 : vector<8x512xf32>
    %87 = vector.extract_strided_slice %86 {offsets = [0, 0], sizes = [8, 384], strides = [1, 1]} : vector<8x512xf32> to vector<8x384xf32>
    %88 = arith.negf %87 : vector<8x384xf32>
    %89 = math.exp %88 : vector<8x384xf32>
    %cst_40 = arith.constant 1.000000e+00 : f32
    %90 = vector.broadcast %cst_40 : f32 to vector<8x384xf32>
    %91 = arith.addf %90, %89 : vector<8x384xf32>
    %92 = arith.divf %90, %91 : vector<8x384xf32>
    %93 = vector.extract_strided_slice %86 {offsets = [0, 384], sizes = [8, 128], strides = [1, 1]} : vector<8x512xf32> to vector<8x128xf32>
    %94 = math.tanh %93 : vector<8x128xf32>
    %95 = vector.extract_strided_slice %92 {offsets = [0, 128], sizes = [8, 128], strides = [1, 1]} : vector<8x384xf32> to vector<8x128xf32>
    %96 = arith.mulf %95, %78 : vector<8x128xf32>
    %97 = vector.extract_strided_slice %92 {offsets = [0, 0], sizes = [8, 128], strides = [1, 1]} : vector<8x384xf32> to vector<8x128xf32>
    %98 = arith.mulf %97, %94 : vector<8x128xf32>
    %99 = arith.addf %96, %98 : vector<8x128xf32>
    %100 = vector.extract_strided_slice %92 {offsets = [0, 256], sizes = [8, 128], strides = [1, 1]} : vector<8x384xf32> to vector<8x128xf32>
    %101 = math.tanh %99 : vector<8x128xf32>
    %102 = arith.mulf %100, %101 : vector<8x128xf32>
    %c24_41 = arith.constant 24 : index
    %c0_42 = arith.constant 0 : index
    %103 = vector.load %arg14[%c24_41, %c0_42] : memref<64x128xf32, #tpu.memory_space<vmem>>, vector<8x128xf32>
    tpu.vector_store %arg14[%c24_41, %c0_42], %102 {strides = array<i32>} : memref<64x128xf32, #tpu.memory_space<vmem>>, vector<8x128xf32>,
    %c32 = arith.constant 32 : index
    %c0_43 = arith.constant 0 : index
    %104 = vector.load %arg13[%c32, %c0_43] : memref<64x512xf32, #tpu.memory_space<vmem>>, vector<8x512xf32>
    %105 = arith.truncf %102 : vector<8x128xf32> to vector<8x128xbf16>
    %cst_44 = arith.constant dense<0.000000e+00> : vector<8x512xf32>
    %106 = tpu.matmul %105, %17, %cst_44 {dimension_numbers = #tpu.dot_dimension_numbers<[1], [0], [0], [1], [0, 0, 1, 1], [], []>} : vector<8x128xbf16>, vector<128x512xbf16>, vector<8x512xf32> -> vector<8x512xf32>
    %107 = arith.addf %104, %106 : vector<8x512xf32>
    %108 = vector.extract_strided_slice %107 {offsets = [0, 0], sizes = [8, 384], strides = [1, 1]} : vector<8x512xf32> to vector<8x384xf32>
    %109 = arith.negf %108 : vector<8x384xf32>
    %110 = math.exp %109 : vector<8x384xf32>
    %cst_45 = arith.constant 1.000000e+00 : f32
    %111 = vector.broadcast %cst_45 : f32 to vector<8x384xf32>
    %112 = arith.addf %111, %110 : vector<8x384xf32>
    %113 = arith.divf %111, %112 : vector<8x384xf32>
    %114 = vector.extract_strided_slice %107 {offsets = [0, 384], sizes = [8, 128], strides = [1, 1]} : vector<8x512xf32> to vector<8x128xf32>
    %115 = math.tanh %114 : vector<8x128xf32>
    %116 = vector.extract_strided_slice %113 {offsets = [0, 128], sizes = [8, 128], strides = [1, 1]} : vector<8x384xf32> to vector<8x128xf32>
    %117 = arith.mulf %116, %99 : vector<8x128xf32>
    %118 = vector.extract_strided_slice %113 {offsets = [0, 0], sizes = [8, 128], strides = [1, 1]} : vector<8x384xf32> to vector<8x128xf32>
    %119 = arith.mulf %118, %115 : vector<8x128xf32>
    %120 = arith.addf %117, %119 : vector<8x128xf32>
    %121 = vector.extract_strided_slice %113 {offsets = [0, 256], sizes = [8, 128], strides = [1, 1]} : vector<8x384xf32> to vector<8x128xf32>
    %122 = math.tanh %120 : vector<8x128xf32>
    %123 = arith.mulf %121, %122 : vector<8x128xf32>
    %c32_46 = arith.constant 32 : index
    %c0_47 = arith.constant 0 : index
    %124 = vector.load %arg14[%c32_46, %c0_47] : memref<64x128xf32, #tpu.memory_space<vmem>>, vector<8x128xf32>
    tpu.vector_store %arg14[%c32_46, %c0_47], %123 {strides = array<i32>} : memref<64x128xf32, #tpu.memory_space<vmem>>, vector<8x128xf32>,
    %c40 = arith.constant 40 : index
    %c0_48 = arith.constant 0 : index
    %125 = vector.load %arg13[%c40, %c0_48] : memref<64x512xf32, #tpu.memory_space<vmem>>, vector<8x512xf32>
    %126 = arith.truncf %123 : vector<8x128xf32> to vector<8x128xbf16>
    %cst_49 = arith.constant dense<0.000000e+00> : vector<8x512xf32>
    %127 = tpu.matmul %126, %17, %cst_49 {dimension_numbers = #tpu.dot_dimension_numbers<[1], [0], [0], [1], [0, 0, 1, 1], [], []>} : vector<8x128xbf16>, vector<128x512xbf16>, vector<8x512xf32> -> vector<8x512xf32>
    %128 = arith.addf %125, %127 : vector<8x512xf32>
    %129 = vector.extract_strided_slice %128 {offsets = [0, 0], sizes = [8, 384], strides = [1, 1]} : vector<8x512xf32> to vector<8x384xf32>
    %130 = arith.negf %129 : vector<8x384xf32>
    %131 = math.exp %130 : vector<8x384xf32>
    %cst_50 = arith.constant 1.000000e+00 : f32
    %132 = vector.broadcast %cst_50 : f32 to vector<8x384xf32>
    %133 = arith.addf %132, %131 : vector<8x384xf32>
    %134 = arith.divf %132, %133 : vector<8x384xf32>
    %135 = vector.extract_strided_slice %128 {offsets = [0, 384], sizes = [8, 128], strides = [1, 1]} : vector<8x512xf32> to vector<8x128xf32>
    %136 = math.tanh %135 : vector<8x128xf32>
    %137 = vector.extract_strided_slice %134 {offsets = [0, 128], sizes = [8, 128], strides = [1, 1]} : vector<8x384xf32> to vector<8x128xf32>
    %138 = arith.mulf %137, %120 : vector<8x128xf32>
    %139 = vector.extract_strided_slice %134 {offsets = [0, 0], sizes = [8, 128], strides = [1, 1]} : vector<8x384xf32> to vector<8x128xf32>
    %140 = arith.mulf %139, %136 : vector<8x128xf32>
    %141 = arith.addf %138, %140 : vector<8x128xf32>
    %142 = vector.extract_strided_slice %134 {offsets = [0, 256], sizes = [8, 128], strides = [1, 1]} : vector<8x384xf32> to vector<8x128xf32>
    %143 = math.tanh %141 : vector<8x128xf32>
    %144 = arith.mulf %142, %143 : vector<8x128xf32>
    %c40_51 = arith.constant 40 : index
    %c0_52 = arith.constant 0 : index
    %145 = vector.load %arg14[%c40_51, %c0_52] : memref<64x128xf32, #tpu.memory_space<vmem>>, vector<8x128xf32>
    tpu.vector_store %arg14[%c40_51, %c0_52], %144 {strides = array<i32>} : memref<64x128xf32, #tpu.memory_space<vmem>>, vector<8x128xf32>,
    %c48 = arith.constant 48 : index
    %c0_53 = arith.constant 0 : index
    %146 = vector.load %arg13[%c48, %c0_53] : memref<64x512xf32, #tpu.memory_space<vmem>>, vector<8x512xf32>
    %147 = arith.truncf %144 : vector<8x128xf32> to vector<8x128xbf16>
    %cst_54 = arith.constant dense<0.000000e+00> : vector<8x512xf32>
    %148 = tpu.matmul %147, %17, %cst_54 {dimension_numbers = #tpu.dot_dimension_numbers<[1], [0], [0], [1], [0, 0, 1, 1], [], []>} : vector<8x128xbf16>, vector<128x512xbf16>, vector<8x512xf32> -> vector<8x512xf32>
    %149 = arith.addf %146, %148 : vector<8x512xf32>
    %150 = vector.extract_strided_slice %149 {offsets = [0, 0], sizes = [8, 384], strides = [1, 1]} : vector<8x512xf32> to vector<8x384xf32>
    %151 = arith.negf %150 : vector<8x384xf32>
    %152 = math.exp %151 : vector<8x384xf32>
    %cst_55 = arith.constant 1.000000e+00 : f32
    %153 = vector.broadcast %cst_55 : f32 to vector<8x384xf32>
    %154 = arith.addf %153, %152 : vector<8x384xf32>
    %155 = arith.divf %153, %154 : vector<8x384xf32>
    %156 = vector.extract_strided_slice %149 {offsets = [0, 384], sizes = [8, 128], strides = [1, 1]} : vector<8x512xf32> to vector<8x128xf32>
    %157 = math.tanh %156 : vector<8x128xf32>
    %158 = vector.extract_strided_slice %155 {offsets = [0, 128], sizes = [8, 128], strides = [1, 1]} : vector<8x384xf32> to vector<8x128xf32>
    %159 = arith.mulf %158, %141 : vector<8x128xf32>
    %160 = vector.extract_strided_slice %155 {offsets = [0, 0], sizes = [8, 128], strides = [1, 1]} : vector<8x384xf32> to vector<8x128xf32>
    %161 = arith.mulf %160, %157 : vector<8x128xf32>
    %162 = arith.addf %159, %161 : vector<8x128xf32>
    %163 = vector.extract_strided_slice %155 {offsets = [0, 256], sizes = [8, 128], strides = [1, 1]} : vector<8x384xf32> to vector<8x128xf32>
    %164 = math.tanh %162 : vector<8x128xf32>
    %165 = arith.mulf %163, %164 : vector<8x128xf32>
    %c48_56 = arith.constant 48 : index
    %c0_57 = arith.constant 0 : index
    %166 = vector.load %arg14[%c48_56, %c0_57] : memref<64x128xf32, #tpu.memory_space<vmem>>, vector<8x128xf32>
    tpu.vector_store %arg14[%c48_56, %c0_57], %165 {strides = array<i32>} : memref<64x128xf32, #tpu.memory_space<vmem>>, vector<8x128xf32>,
    %c56 = arith.constant 56 : index
    %c0_58 = arith.constant 0 : index
    %167 = vector.load %arg13[%c56, %c0_58] : memref<64x512xf32, #tpu.memory_space<vmem>>, vector<8x512xf32>
    %168 = arith.truncf %165 : vector<8x128xf32> to vector<8x128xbf16>
    %cst_59 = arith.constant dense<0.000000e+00> : vector<8x512xf32>
    %169 = tpu.matmul %168, %17, %cst_59 {dimension_numbers = #tpu.dot_dimension_numbers<[1], [0], [0], [1], [0, 0, 1, 1], [], []>} : vector<8x128xbf16>, vector<128x512xbf16>, vector<8x512xf32> -> vector<8x512xf32>
    %170 = arith.addf %167, %169 : vector<8x512xf32>
    %171 = vector.extract_strided_slice %170 {offsets = [0, 0], sizes = [8, 384], strides = [1, 1]} : vector<8x512xf32> to vector<8x384xf32>
    %172 = arith.negf %171 : vector<8x384xf32>
    %173 = math.exp %172 : vector<8x384xf32>
    %cst_60 = arith.constant 1.000000e+00 : f32
    %174 = vector.broadcast %cst_60 : f32 to vector<8x384xf32>
    %175 = arith.addf %174, %173 : vector<8x384xf32>
    %176 = arith.divf %174, %175 : vector<8x384xf32>
    %177 = vector.extract_strided_slice %170 {offsets = [0, 384], sizes = [8, 128], strides = [1, 1]} : vector<8x512xf32> to vector<8x128xf32>
    %178 = math.tanh %177 : vector<8x128xf32>
    %179 = vector.extract_strided_slice %176 {offsets = [0, 128], sizes = [8, 128], strides = [1, 1]} : vector<8x384xf32> to vector<8x128xf32>
    %180 = arith.mulf %179, %162 : vector<8x128xf32>
    %181 = vector.extract_strided_slice %176 {offsets = [0, 0], sizes = [8, 128], strides = [1, 1]} : vector<8x384xf32> to vector<8x128xf32>
    %182 = arith.mulf %181, %178 : vector<8x128xf32>
    %183 = arith.addf %180, %182 : vector<8x128xf32>
    %184 = vector.extract_strided_slice %176 {offsets = [0, 256], sizes = [8, 128], strides = [1, 1]} : vector<8x384xf32> to vector<8x128xf32>
    %185 = math.tanh %183 : vector<8x128xf32>
    %186 = arith.mulf %184, %185 : vector<8x128xf32>
    %c56_61 = arith.constant 56 : index
    %c0_62 = arith.constant 0 : index
    %187 = vector.load %arg14[%c56_61, %c0_62] : memref<64x128xf32, #tpu.memory_space<vmem>>, vector<8x128xf32>
    tpu.vector_store %arg14[%c56_61, %c0_62], %186 {strides = array<i32>} : memref<64x128xf32, #tpu.memory_space<vmem>>, vector<8x128xf32>,
    %c0_63 = arith.constant 0 : index
    %c0_64 = arith.constant 0 : index
    %188 = vector.load %arg10[%c0_63, %c0_64] : memref<8x128xf32, #tpu.memory_space<vmem>>, vector<8x128xf32>
    tpu.vector_store %arg10[%c0_63, %c0_64], %186 {strides = array<i32>} : memref<8x128xf32, #tpu.memory_space<vmem>>, vector<8x128xf32>,
    %c0_65 = arith.constant 0 : index
    %c0_66 = arith.constant 0 : index
    %189 = vector.load %arg11[%c0_65, %c0_66] : memref<8x128xf32, #tpu.memory_space<vmem>>, vector<8x128xf32>
    tpu.vector_store %arg11[%c0_65, %c0_66], %183 {strides = array<i32>} : memref<8x128xf32, #tpu.memory_space<vmem>>, vector<8x128xf32>,
    %c0_67 = arith.constant 0 : index
    %c0_68 = arith.constant 0 : index
    %190 = vector.load %arg14[%c0_67, %c0_68] : memref<64x128xf32, #tpu.memory_space<vmem>>, vector<64x128xf32>
    %191 = arith.truncf %190 : vector<64x128xf32> to vector<64x128xbf16>
    %c0_69 = arith.constant 0 : index
    %c0_70 = arith.constant 0 : index
    %192 = vector.load %arg7[%c0_69, %c0_70] : memref<128x128xbf16, #tpu.memory_space<vmem>>, vector<128x128xbf16>
    %cst_71 = arith.constant dense<0.000000e+00> : vector<64x128xf32>
    %193 = tpu.matmul %191, %192, %cst_71 {dimension_numbers = #tpu.dot_dimension_numbers<[1], [0], [0], [1], [0, 0, 1, 1], [], []>} : vector<64x128xbf16>, vector<128x128xbf16>, vector<64x128xf32> -> vector<64x128xf32>
    %c0_72 = arith.constant 0 : index
    %c0_73 = arith.constant 0 : index
    %194 = vector.load %arg8[%c0_72, %c0_73] : memref<1x128xf32, #tpu.memory_space<vmem>>, vector<1x128xf32>
    %195 = vector.broadcast %194 : vector<1x128xf32> to vector<64x128xf32>
    %196 = arith.addf %193, %195 : vector<64x128xf32>
    %cst_74 = arith.constant dense<0xFF800000> : vector<64xf32>
    %197 = vector.multi_reduction <maximumf>, %196, %cst_74 [1] : vector<64x128xf32> to vector<64xf32>
    %198 = vector.shape_cast %197 : vector<64xf32> to vector<64x1xf32>
    %199 = vector.broadcast %198 : vector<64x1xf32> to vector<64x128xf32>
    %200 = arith.subf %196, %199 : vector<64x128xf32>
    %201 = math.exp %200 : vector<64x128xf32>
    %cst_75 = arith.constant dense<0.000000e+00> : vector<64xf32>
    %202 = vector.multi_reduction <add>, %201, %cst_75 [1] : vector<64x128xf32> to vector<64xf32>
    %203 = vector.shape_cast %202 : vector<64xf32> to vector<64x1xf32>
    %204 = math.log %203 : vector<64x1xf32>
    %205 = vector.broadcast %204 : vector<64x1xf32> to vector<64x128xf32>
    %206 = arith.subf %200, %205 : vector<64x128xf32>
    %c0_76 = arith.constant 0 : index
    %c0_77 = arith.constant 0 : index
    %207 = vector.load %arg9[%c0_76, %c0_77] : memref<64x128xf32, #tpu.memory_space<vmem>>, vector<64x128xf32>
    tpu.vector_store %arg9[%c0_76, %c0_77], %206 {strides = array<i32>} : memref<64x128xf32, #tpu.memory_space<vmem>>, vector<64x128xf32>,
    return
  }
}

</mosaic_0001>

<llo_original>
// kernel: name_generator_forward.1
$region0: #{name_generator_forward.1}
  #allocation0 [shape = 'u32[]', space=smem, size = 0x4, offset = 0x4, fixed_abs, tag = 'smem constant byte address 0x4 - core index']
  #allocation1 [shape = 'u32[144,128]{1,0:T(1,128)}', space=vmem, size = 0x12000, scoped, tag = 'internal scratch']
  #allocation2 [shape = 'f32[64,512]{1,0:T(8,128)}', space=vmem, size = 0x20000, scoped, tag = 'scratch operand']
  #allocation3 [shape = 'f32[64,512]{1,0:T(8,128)}', space=vmem, size = 0x20000, scoped, tag = 'scratch operand']
  #allocation4 [shape = 'f32[64,128]{1,0:T(8,128)}', space=vmem, size = 0x8000, scoped, tag = 'scratch operand']
  %s0 = inlined_call_operand.vmem [shape: s32[64,1], index: 0, kind: input, shape index: {}]
  %s1 = inlined_call_operand.vmem [shape: f32[8,128], index: 1, kind: input, shape index: {}]
  %s2 = inlined_call_operand.vmem [shape: f32[8,128], index: 2, kind: input, shape index: {}]
  %s3 = inlined_call_operand.vmem [shape: bf16[64,128], index: 3, kind: input, shape index: {}]
  %s4 = inlined_call_operand.vmem [shape: bf16[128,512], index: 4, kind: input, shape index: {}]
  %s5 = inlined_call_operand.vmem [shape: f32[1,512], index: 5, kind: input, shape index: {}]
  %s6 = inlined_call_operand.vmem [shape: bf16[128,512], index: 6, kind: input, shape index: {}]
  %s7 = inlined_call_operand.vmem [shape: bf16[128,128], index: 7, kind: input, shape index: {}]
  %s8 = inlined_call_operand.vmem [shape: f32[1,128], index: 8, kind: input, shape index: {}]
  %s9 = inlined_call_operand.vmem [shape: f32[64,128], index: 9, kind: output, shape index: {0}]
  %s10 = inlined_call_operand.vmem [shape: f32[8,128], index: 10, kind: output, shape index: {1}]
  %s11 = inlined_call_operand.vmem [shape: f32[8,128], index: 11, kind: output, shape index: {2}]
  %12 = xla_tuple %s9, %s10, %s11
  %s13 = sld [smem:[#allocation0]]
  $region62: #{name_generator_forward.1} parent=0
    _
  %s15 = ssub.s32 1, %s13
  %s16 = scalar_select 0, %s15, %s13
  // Predicated region
  $region2: #{name_generator_forward.1} parent=0 // pred_check
    _
  $region3: #{name_generator_forward.1} parent=0 // pred_check_branch
    %18 = sbr.rel (0) target = $region5
  $region4: #{name_generator_forward.1} parent=0 // pred_region
    _
  $region5: #{name_generator_forward.1} parent=0 // pred_fallthru
    _
  // Predicated region
  $region6: #{name_generator_forward.1} parent=0 // pred_check
    _
  $region7: #{name_generator_forward.1} parent=0 // pred_check_branch
    %20 = sbr.rel (0) target = $region9
  $region8: #{name_generator_forward.1} parent=0 // pred_region
    _
  $region9: #{name_generator_forward.1} parent=0 // pred_fallthru
    _
  // Predicated region
  $region10: #{name_generator_forward.1} parent=0 // pred_check
    _
  $region11: #{name_generator_forward.1} parent=0 // pred_check_branch
    %22 = sbr.rel (0) target = $region13
  $region12: #{name_generator_forward.1} parent=0 // pred_region
    _
  $region13: #{name_generator_forward.1} parent=0 // pred_fallthru
    _
  // Predicated region
  $region14: #{name_generator_forward.1} parent=0 // pred_check
    _
  $region15: #{name_generator_forward.1} parent=0 // pred_check_branch
    %24 = sbr.rel (0) target = $region17
  $region16: #{name_generator_forward.1} parent=0 // pred_region
    _
  $region17: #{name_generator_forward.1} parent=0 // pred_fallthru
    _
  // Predicated region
  $region18: #{name_generator_forward.1} parent=0 // pred_check
    _
  $region19: #{name_generator_forward.1} parent=0 // pred_check_branch
    %26 = sbr.rel (0) target = $region21
  $region20: #{name_generator_forward.1} parent=0 // pred_region
    _
  $region21: #{name_generator_forward.1} parent=0 // pred_fallthru
    _
  // Predicated region
  $region22: #{name_generator_forward.1} parent=0 // pred_check
    _
  $region23: #{name_generator_forward.1} parent=0 // pred_check_branch
    %28 = sbr.rel (0) target = $region25
  $region24: #{name_generator_forward.1} parent=0 // pred_region
    _
  $region25: #{name_generator_forward.1} parent=0 // pred_fallthru
    _
  // Predicated region
  $region26: #{name_generator_forward.1} parent=0 // pred_check
    _
  $region27: #{name_generator_forward.1} parent=0 // pred_check_branch
    %30 = sbr.rel (0) target = $region29
  $region28: #{name_generator_forward.1} parent=0 // pred_region
    _
  $region29: #{name_generator_forward.1} parent=0 // pred_fallthru
    _
  // Predicated region
  $region30: #{name_generator_forward.1} parent=0 // pred_check
    _
  $region31: #{name_generator_forward.1} parent=0 // pred_check_branch
    %32 = sbr.rel (0) target = $region33
  $region32: #{name_generator_forward.1} parent=0 // pred_region
    _
  $region33: #{name_generator_forward.1} parent=0 // pred_fallthru
    _
  // Predicated region
  $region34: #{name_generator_forward.1} parent=0 // pred_check
    _
  $region35: #{name_generator_forward.1} parent=0 // pred_check_branch
    %34 = sbr.rel (0) target = $region37
  $region36: #{name_generator_forward.1} parent=0 // pred_region
    _
  $region37: #{name_generator_forward.1} parent=0 // pred_fallthru
    _
  %v36 = vld [vmem:[%s3] sm:$0xf]
  %v37 = vld [vmem:[%s3 + $0x4] sm:$0xf]
  %v38 = vld [vmem:[%s3 + $0x8] sm:$0xf]
  %v39 = vld [vmem:[%s3 + $0xc] sm:$0xf]
  %v40 = vld [vmem:[%s3 + $0x10] sm:$0xf]
  %v41 = vld [vmem:[%s3 + $0x14] sm:$0xf]
  %v42 = vld [vmem:[%s3 + $0x18] sm:$0xf]
  %v43 = vld [vmem:[%s3 + $0x1c] sm:$0xf]
  %v44 = vld [vmem:[%s4] sm:$0xff]
  %v45 = vld [vmem:[%s4 + $0x8] sm:$0xff]
  %v46 = vld [vmem:[%s4 + $0x10] sm:$0xff]
  %v47 = vld [vmem:[%s4 + $0x18] sm:$0xff]
  %v48 = vld [vmem:[%s4 + $0x20] sm:$0xff]
  %v49 = vld [vmem:[%s4 + $0x28] sm:$0xff]
  %v50 = vld [vmem:[%s4 + $0x30] sm:$0xff]
  %v51 = vld [vmem:[%s4 + $0x38] sm:$0xff]
  %v52 = vld [vmem:[%s4 + $0x40] sm:$0xff]
  %v53 = vld [vmem:[%s4 + $0x48] sm:$0xff]
  %v54 = vld [vmem:[%s4 + $0x50] sm:$0xff]
  %v55 = vld [vmem:[%s4 + $0x58] sm:$0xff]
  %v56 = vld [vmem:[%s4 + $0x60] sm:$0xff]
  %v57 = vld [vmem:[%s4 + $0x68] sm:$0xff]
  %v58 = vld [vmem:[%s4 + $0x70] sm:$0xff]
  %v59 = vld [vmem:[%s4 + $0x78] sm:$0xff]
  %v60 = vld [vmem:[%s4 + $0x80] sm:$0xff]
  %v61 = vld [vmem:[%s4 + $0x88] sm:$0xff]
  %v62 = vld [vmem:[%s4 + $0x90] sm:$0xff]
  %v63 = vld [vmem:[%s4 + $0x98] sm:$0xff]
  %v64 = vld [vmem:[%s4 + $0xa0] sm:$0xff]
  %v65 = vld [vmem:[%s4 + $0xa8] sm:$0xff]
  %v66 = vld [vmem:[%s4 + $0xb0] sm:$0xff]
  %v67 = vld [vmem:[%s4 + $0xb8] sm:$0xff]
  %v68 = vld [vmem:[%s4 + $0xc0] sm:$0xff]
  %v69 = vld [vmem:[%s4 + $0xc8] sm:$0xff]
  %v70 = vld [vmem:[%s4 + $0xd0] sm:$0xff]
  %v71 = vld [vmem:[%s4 + $0xd8] sm:$0xff]
  %v72 = vld [vmem:[%s4 + $0xe0] sm:$0xff]
  %v73 = vld [vmem:[%s4 + $0xe8] sm:$0xff]
  %v74 = vld [vmem:[%s4 + $0xf0] sm:$0xff]
  %v75 = vld [vmem:[%s4 + $0xf8] sm:$0xff]
  %v76 = vld [vmem:[%s5] sm:$0xf]
  %v78 = vlaneseq
  %v79 = vshrl.u32 %v78, 7
  %v80 = vsub.s32 0, %v79
  %v81 = vrot.slane %v76, %v80
  %v82 = vlaneseq
  %v83 = vshrl.u32 %v82, 7
  %v84 = vsub.s32 1, %v83
  %v85 = vrot.slane %v76, %v84
  %v86 = vlaneseq
  %v87 = vshrl.u32 %v86, 7
  %v88 = vsub.s32 2, %v87
  %v89 = vrot.slane %v76, %v88
  %v90 = vlaneseq
  %v91 = vshrl.u32 %v90, 7
  %v92 = vsub.s32 3, %v91
  %v93 = vrot.slane %v76, %v92
  %v106 = vunpack.c.l.b16 %v36
  %v107 = vunpack.c.l.b16 %v37
  %v108 = vunpack.c.l.b16 %v38
  %v109 = vunpack.c.l.b16 %v39
  %v110 = vunpack.c.l.b16 %v40
  %v111 = vunpack.c.l.b16 %v41
  %v112 = vunpack.c.l.b16 %v42
  %v113 = vunpack.c.l.b16 %v43
  %v114 = vpack.c.b16 %v107, %v106
  %v115 = vpack.c.b16 %v109, %v108
  %v116 = vpack.c.b16 %v111, %v110
  %v117 = vpack.c.b16 %v113, %v112
  %v154 = vunpack.c.l.b16 %v44
  %v155 = vunpack.c.h.b16 %v44
  %v156 = vunpack.c.l.b16 %v45
  %v157 = vunpack.c.h.b16 %v45
  %v158 = vunpack.c.l.b16 %v46
  %v159 = vunpack.c.h.b16 %v46
  %v160 = vunpack.c.l.b16 %v47
  %v161 = vunpack.c.h.b16 %v47
  %v162 = vunpack.c.l.b16 %v48
  %v163 = vunpack.c.h.b16 %v48
  %v164 = vunpack.c.l.b16 %v49
  %v165 = vunpack.c.h.b16 %v49
  %v166 = vunpack.c.l.b16 %v50
  %v167 = vunpack.c.h.b16 %v50
  %v168 = vunpack.c.l.b16 %v51
  %v169 = vunpack.c.h.b16 %v51
  %v170 = vunpack.c.l.b16 %v52
  %v171 = vunpack.c.h.b16 %v52
  %v172 = vunpack.c.l.b16 %v53
  %v173 = vunpack.c.h.b16 %v53
  %v174 = vunpack.c.l.b16 %v54
  %v175 = vunpack.c.h.b16 %v54
  %v176 = vunpack.c.l.b16 %v55
  %v177 = vunpack.c.h.b16 %v55
  %v178 = vunpack.c.l.b16 %v56
  %v179 = vunpack.c.h.b16 %v56
  %v180 = vunpack.c.l.b16 %v57
  %v181 = vunpack.c.h.b16 %v57
  %v182 = vunpack.c.l.b16 %v58
  %v183 = vunpack.c.h.b16 %v58
  %v184 = vunpack.c.l.b16 %v59
  %v185 = vunpack.c.h.b16 %v59
  %v186 = vunpack.c.l.b16 %v60
  %v187 = vunpack.c.h.b16 %v60
  %v188 = vunpack.c.l.b16 %v61
  %v189 = vunpack.c.h.b16 %v61
  %v190 = vunpack.c.l.b16 %v62
  %v191 = vunpack.c.h.b16 %v62
  %v192 = vunpack.c.l.b16 %v63
  %v193 = vunpack.c.h.b16 %v63
  %v194 = vunpack.c.l.b16 %v64
  %v195 = vunpack.c.h.b16 %v64
  %v196 = vunpack.c.l.b16 %v65
  %v197 = vunpack.c.h.b16 %v65
  %v198 = vunpack.c.l.b16 %v66
  %v199 = vunpack.c.h.b16 %v66
  %v200 = vunpack.c.l.b16 %v67
  %v201 = vunpack.c.h.b16 %v67
  %v202 = vunpack.c.l.b16 %v68
  %v203 = vunpack.c.h.b16 %v68
  %v204 = vunpack.c.l.b16 %v69
  %v205 = vunpack.c.h.b16 %v69
  %v206 = vunpack.c.l.b16 %v70
  %v207 = vunpack.c.h.b16 %v70
  %v208 = vunpack.c.l.b16 %v71
  %v209 = vunpack.c.h.b16 %v71
  %v210 = vunpack.c.l.b16 %v72
  %v211 = vunpack.c.h.b16 %v72
  %v212 = vunpack.c.l.b16 %v73
  %v213 = vunpack.c.h.b16 %v73
  %v214 = vunpack.c.l.b16 %v74
  %v215 = vunpack.c.h.b16 %v74
  %v216 = vunpack.c.l.b16 %v75
  %v217 = vunpack.c.h.b16 %v75
  %v218 = vpack.c.b16 %v158, %v154
  %v219 = vpack.c.b16 %v159, %v155
  %v220 = vpack.c.b16 %v160, %v156
  %v221 = vpack.c.b16 %v161, %v157
  %v222 = vpack.c.b16 %v166, %v162
  %v223 = vpack.c.b16 %v167, %v163
  %v224 = vpack.c.b16 %v168, %v164
  %v225 = vpack.c.b16 %v169, %v165
  %v226 = vpack.c.b16 %v174, %v170
  %v227 = vpack.c.b16 %v175, %v171
  %v228 = vpack.c.b16 %v176, %v172
  %v229 = vpack.c.b16 %v177, %v173
  %v230 = vpack.c.b16 %v182, %v178
  %v231 = vpack.c.b16 %v183, %v179
  %v232 = vpack.c.b16 %v184, %v180
  %v233 = vpack.c.b16 %v185, %v181
  %v234 = vpack.c.b16 %v190, %v186
  %v235 = vpack.c.b16 %v191, %v187
  %v236 = vpack.c.b16 %v192, %v188
  %v237 = vpack.c.b16 %v193, %v189
  %v238 = vpack.c.b16 %v198, %v194
  %v239 = vpack.c.b16 %v199, %v195
  %v240 = vpack.c.b16 %v200, %v196
  %v241 = vpack.c.b16 %v201, %v197
  %v242 = vpack.c.b16 %v206, %v202
  %v243 = vpack.c.b16 %v207, %v203
  %v244 = vpack.c.b16 %v208, %v204
  %v245 = vpack.c.b16 %v209, %v205
  %v246 = vpack.c.b16 %v214, %v210
  %v247 = vpack.c.b16 %v215, %v211
  %v248 = vpack.c.b16 %v216, %v212
  %v249 = vpack.c.b16 %v217, %v213
  %282 = vmatprep.subr.bf16.mxu0 %v247
  %283 = vmatpush1.bf16.msra.mxu0 %v246
  %284 = vmatprep.subr.bf16.mxu0 %v243
  %285 = vmatpush1.bf16.msra.mxu0 %v242
  %286 = vmatprep.subr.bf16.mxu0 %v239
  %287 = vmatpush1.bf16.msra.mxu0 %v238
  %288 = vmatprep.subr.bf16.mxu0 %v235
  %289 = vmatpush1.bf16.msra.mxu0 %v234
  %290 = vmatprep.subr.bf16.mxu0 %v231
  %291 = vmatpush1.bf16.msra.mxu0 %v230
  %292 = vmatprep.subr.bf16.mxu0 %v227
  %293 = vmatpush1.bf16.msra.mxu0 %v226
  %294 = vmatprep.subr.bf16.mxu0 %v223
  %295 = vmatpush1.bf16.msra.mxu0 %v222
  %296 = vmatprep.subr.bf16.mxu0 %v219
  %297 = vmatpush1.bf16.msra.mxu0 %v218
  %298 = vmatprep.subr.bf16.mxu0 0
  %299 = vmatpush2.bf16.msra.mxu0 0
  %300 = vmatprep.subr.bf16.mxu0 0
  %301 = vmatpush2.bf16.msra.mxu0 0
  %302 = vmatprep.subr.bf16.mxu0 0
  %303 = vmatpush2.bf16.msra.mxu0 0
  %304 = vmatprep.subr.bf16.mxu0 0
  %305 = vmatpush2.bf16.msra.mxu0 0
  %306 = vmatprep.subr.bf16.mxu0 0
  %307 = vmatpush2.bf16.msra.mxu0 0
  %308 = vmatprep.subr.bf16.mxu0 0
  %309 = vmatpush2.bf16.msra.mxu0 0
  %310 = vmatprep.subr.bf16.mxu0 0
  %311 = vmatpush2.bf16.msra.mxu0 0
  %312 = vmatprep.subr.bf16.mxu0 0
  %313 = vmatpush2.bf16.msra.mxu0 0
  %314 = vmatprep.mubr.bf16.mxu0 0
  %315 = vmatmul.mubr.bf16.gmra.mxu0 %v114
  %v316 = vpop.f32.mrf.mxu0
  %v317 = vadd.f32 %v81, %v316
  %v318 = vpop.f32.mrf.mxu0
  %v319 = vadd.f32 %v85, %v318
  %v320 = vpop.f32.mrf.mxu0
  %v321 = vadd.f32 %v81, %v320
  %v322 = vpop.f32.mrf.mxu0
  %v323 = vadd.f32 %v85, %v322
  %324 = vmatprep.mubr.bf16.mxu0 0
  %325 = vmatmul.mubr.bf16.gmra.mxu0 %v115
  %v326 = vpop.f32.mrf.mxu0
  %v327 = vadd.f32 %v81, %v326
  %v328 = vpop.f32.mrf.mxu0
  %v329 = vadd.f32 %v85, %v328
  %v330 = vpop.f32.mrf.mxu0
  %v331 = vadd.f32 %v81, %v330
  %v332 = vpop.f32.mrf.mxu0
  %v333 = vadd.f32 %v85, %v332
  %334 = vmatprep.mubr.bf16.mxu0 0
  %335 = vmatmul.mubr.bf16.gmra.mxu0 %v116
  %v336 = vpop.f32.mrf.mxu0
  %v337 = vadd.f32 %v81, %v336
  %v338 = vpop.f32.mrf.mxu0
  %v339 = vadd.f32 %v85, %v338
  %v340 = vpop.f32.mrf.mxu0
  %v341 = vadd.f32 %v81, %v340
  %v342 = vpop.f32.mrf.mxu0
  %v343 = vadd.f32 %v85, %v342
  %344 = vmatprep.mubr.bf16.mxu0 0
  %345 = vmatmul.mubr.bf16.gmra.mxu0 %v117
  %v346 = vpop.f32.mrf.mxu0
  %v347 = vadd.f32 %v81, %v346
  %v348 = vpop.f32.mrf.mxu0
  %v349 = vadd.f32 %v85, %v348
  %v350 = vpop.f32.mrf.mxu0
  %v351 = vadd.f32 %v81, %v350
  %v352 = vpop.f32.mrf.mxu0
  %v353 = vadd.f32 %v85, %v352
  %354 = vdwg.mxu0
  %355 = vmatprep.subr.bf16.mxu0 %v249
  %356 = vmatpush1.bf16.msra.mxu0 %v248
  %357 = vmatprep.subr.bf16.mxu0 %v245
  %358 = vmatpush1.bf16.msra.mxu0 %v244
  %359 = vmatprep.subr.bf16.mxu0 %v241
  %360 = vmatpush1.bf16.msra.mxu0 %v240
  %361 = vmatprep.subr.bf16.mxu0 %v237
  %362 = vmatpush1.bf16.msra.mxu0 %v236
  %363 = vmatprep.subr.bf16.mxu0 %v233
  %364 = vmatpush1.bf16.msra.mxu0 %v232
  %365 = vmatprep.subr.bf16.mxu0 %v229
  %366 = vmatpush1.bf16.msra.mxu0 %v228
  %367 = vmatprep.subr.bf16.mxu0 %v225
  %368 = vmatpush1.bf16.msra.mxu0 %v224
  %369 = vmatprep.subr.bf16.mxu0 %v221
  %370 = vmatpush1.bf16.msra.mxu0 %v220
  %371 = vmatprep.subr.bf16.mxu0 0
  %372 = vmatpush2.bf16.msra.mxu0 0
  %373 = vmatprep.subr.bf16.mxu0 0
  %374 = vmatpush2.bf16.msra.mxu0 0
  %375 = vmatprep.subr.bf16.mxu0 0
  %376 = vmatpush2.bf16.msra.mxu0 0
  %377 = vmatprep.subr.bf16.mxu0 0
  %378 = vmatpush2.bf16.msra.mxu0 0
  %379 = vmatprep.subr.bf16.mxu0 0
  %380 = vmatpush2.bf16.msra.mxu0 0
  %381 = vmatprep.subr.bf16.mxu0 0
  %382 = vmatpush2.bf16.msra.mxu0 0
  %383 = vmatprep.subr.bf16.mxu0 0
  %384 = vmatpush2.bf16.msra.mxu0 0
  %385 = vmatprep.subr.bf16.mxu0 0
  %386 = vmatpush2.bf16.msra.mxu0 0
  %387 = vmatprep.mubr.bf16.mxu0 0
  %388 = vmatmul.mubr.bf16.gmra.mxu0 %v114
  %v389 = vpop.f32.mrf.mxu0
  %v390 = vadd.f32 %v89, %v389
  %v391 = vpop.f32.mrf.mxu0
  %v392 = vadd.f32 %v93, %v391
  %v393 = vpop.f32.mrf.mxu0
  %v394 = vadd.f32 %v89, %v393
  %v395 = vpop.f32.mrf.mxu0
  %v396 = vadd.f32 %v93, %v395
  %397 = vmatprep.mubr.bf16.mxu0 0
  %398 = vmatmul.mubr.bf16.gmra.mxu0 %v115
  %v399 = vpop.f32.mrf.mxu0
  %v400 = vadd.f32 %v89, %v399
  %v401 = vpop.f32.mrf.mxu0
  %v402 = vadd.f32 %v93, %v401
  %v403 = vpop.f32.mrf.mxu0
  %v404 = vadd.f32 %v89, %v403
  %v405 = vpop.f32.mrf.mxu0
  %v406 = vadd.f32 %v93, %v405
  %407 = vmatprep.mubr.bf16.mxu0 0
  %408 = vmatmul.mubr.bf16.gmra.mxu0 %v116
  %v409 = vpop.f32.mrf.mxu0
  %v410 = vadd.f32 %v89, %v409
  %v411 = vpop.f32.mrf.mxu0
  %v412 = vadd.f32 %v93, %v411
  %v413 = vpop.f32.mrf.mxu0
  %v414 = vadd.f32 %v89, %v413
  %v415 = vpop.f32.mrf.mxu0
  %v416 = vadd.f32 %v93, %v415
  %417 = vmatprep.mubr.bf16.mxu0 0
  %418 = vmatmul.mubr.bf16.gmra.mxu0 %v117
  %v419 = vpop.f32.mrf.mxu0
  %v420 = vadd.f32 %v89, %v419
  %v421 = vpop.f32.mrf.mxu0
  %v422 = vadd.f32 %v93, %v421
  %v423 = vpop.f32.mrf.mxu0
  %v424 = vadd.f32 %v89, %v423
  %v425 = vpop.f32.mrf.mxu0
  %v426 = vadd.f32 %v93, %v425
  %427 = vdwg.mxu0
  %428 = vst [vmem:[#allocation2] sm:$0xff] %v317
  %429 = vst [vmem:[#allocation2 + $0x8] sm:$0xff] %v319
  %430 = vst [vmem:[#allocation2 + $0x10] sm:$0xff] %v390
  %431 = vst [vmem:[#allocation2 + $0x18] sm:$0xff] %v392
  %432 = vst [vmem:[#allocation2 + $0x20] sm:$0xff] %v321
  %433 = vst [vmem:[#allocation2 + $0x28] sm:$0xff] %v323
  %434 = vst [vmem:[#allocation2 + $0x30] sm:$0xff] %v394
  %435 = vst [vmem:[#allocation2 + $0x38] sm:$0xff] %v396
  %436 = vst [vmem:[#allocation2 + $0x40] sm:$0xff] %v327
  %437 = vst [vmem:[#allocation2 + $0x48] sm:$0xff] %v329
  %438 = vst [vmem:[#allocation2 + $0x50] sm:$0xff] %v400
  %439 = vst [vmem:[#allocation2 + $0x58] sm:$0xff] %v402
  %440 = vst [vmem:[#allocation2 + $0x60] sm:$0xff] %v331
  %441 = vst [vmem:[#allocation2 + $0x68] sm:$0xff] %v333
  %442 = vst [vmem:[#allocation2 + $0x70] sm:$0xff] %v404
  %443 = vst [vmem:[#allocation2 + $0x78] sm:$0xff] %v406
  %444 = vst [vmem:[#allocation2 + $0x80] sm:$0xff] %v337
  %445 = vst [vmem:[#allocation2 + $0x88] sm:$0xff] %v339
  %446 = vst [vmem:[#allocation2 + $0x90] sm:$0xff] %v410
  %447 = vst [vmem:[#allocation2 + $0x98] sm:$0xff] %v412
  %448 = vst [vmem:[#allocation2 + $0xa0] sm:$0xff] %v341
  %449 = vst [vmem:[#allocation2 + $0xa8] sm:$0xff] %v343
  %450 = vst [vmem:[#allocation2 + $0xb0] sm:$0xff] %v414
  %451 = vst [vmem:[#allocation2 + $0xb8] sm:$0xff] %v416
  %452 = vst [vmem:[#allocation2 + $0xc0] sm:$0xff] %v347
  %453 = vst [vmem:[#allocation2 + $0xc8] sm:$0xff] %v349
  %454 = vst [vmem:[#allocation2 + $0xd0] sm:$0xff] %v420
  %455 = vst [vmem:[#allocation2 + $0xd8] sm:$0xff] %v422
  %456 = vst [vmem:[#allocation2 + $0xe0] sm:$0xff] %v351
  %457 = vst [vmem:[#allocation2 + $0xe8] sm:$0xff] %v353
  %458 = vst [vmem:[#allocation2 + $0xf0] sm:$0xff] %v424
  %459 = vst [vmem:[#allocation2 + $0xf8] sm:$0xff] %v426
  %v460 = vld [vmem:[%s0] sm:$0xff]
  %v461 = vld [vmem:[%s0 + $0x8] sm:$0xff]
  %v462 = vld [vmem:[%s0 + $0x10] sm:$0xff]
  %v463 = vld [vmem:[%s0 + $0x18] sm:$0xff]
  %v464 = vld [vmem:[%s0 + $0x20] sm:$0xff]
  %v465 = vld [vmem:[%s0 + $0x28] sm:$0xff]
  %v466 = vld [vmem:[%s0 + $0x30] sm:$0xff]
  %v467 = vld [vmem:[%s0 + $0x38] sm:$0xff]
  %v468 = vlaneseq
  %v469 = vand.u32 %v468, 127
  %470 = vset.pattern.permute.xlu0 0
  %471 = vperm.xlu0 %470, %v460
  %v472 = vpop.permute.xlu0 %471
  %473 = vset.pattern.permute.xlu0 0
  %474 = vperm.xlu0 %473, %v461
  %v475 = vpop.permute.xlu0 %474
  %476 = vset.pattern.permute.xlu0 0
  %477 = vperm.xlu0 %476, %v462
  %v478 = vpop.permute.xlu0 %477
  %479 = vset.pattern.permute.xlu0 0
  %480 = vperm.xlu0 %479, %v463
  %v481 = vpop.permute.xlu0 %480
  %482 = vset.pattern.permute.xlu0 0
  %483 = vperm.xlu0 %482, %v464
  %v484 = vpop.permute.xlu0 %483
  %485 = vset.pattern.permute.xlu0 0
  %486 = vperm.xlu0 %485, %v465
  %v487 = vpop.permute.xlu0 %486
  %488 = vset.pattern.permute.xlu0 0
  %489 = vperm.xlu0 %488, %v466
  %v490 = vpop.permute.xlu0 %489
  %491 = vset.pattern.permute.xlu0 0
  %492 = vperm.xlu0 %491, %v467
  %v493 = vpop.permute.xlu0 %492
  %vm494 = vcmp.eq.s32.totalorder %v472, %v469
  %vm495 = vcmp.eq.s32.totalorder %v475, %v469
  %vm496 = vcmp.eq.s32.totalorder %v478, %v469
  %vm497 = vcmp.eq.s32.totalorder %v481, %v469
  %vm498 = vcmp.eq.s32.totalorder %v484, %v469
  %vm499 = vcmp.eq.s32.totalorder %v487, %v469
  %vm500 = vcmp.eq.s32.totalorder %v490, %v469
  %vm501 = vcmp.eq.s32.totalorder %v493, %v469
  %v502 = vsel %vm494, 1.0, 0.0
  %v503 = vsel %vm495, 1.0, 0.0
  %v504 = vsel %vm496, 1.0, 0.0
  %v505 = vsel %vm497, 1.0, 0.0
  %v506 = vsel %vm498, 1.0, 0.0
  %v507 = vsel %vm499, 1.0, 0.0
  %v508 = vsel %vm500, 1.0, 0.0
  %v509 = vsel %vm501, 1.0, 0.0
  %v510 = vld [vmem:[#allocation2] sm:$0xff]
  %v511 = vld [vmem:[#allocation2 + $0x8] sm:$0xff]
  %v512 = vld [vmem:[#allocation2 + $0x10] sm:$0xff]
  %v513 = vld [vmem:[#allocation2 + $0x18] sm:$0xff]
  %v514 = vld [vmem:[#allocation2 + $0x20] sm:$0xff]
  %v515 = vld [vmem:[#allocation2 + $0x28] sm:$0xff]
  %v516 = vld [vmem:[#allocation2 + $0x30] sm:$0xff]
  %v517 = vld [vmem:[#allocation2 + $0x38] sm:$0xff]
  %v518 = vld [vmem:[#allocation2 + $0x40] sm:$0xff]
  %v519 = vld [vmem:[#allocation2 + $0x48] sm:$0xff]
  %v520 = vld [vmem:[#allocation2 + $0x50] sm:$0xff]
  %v521 = vld [vmem:[#allocation2 + $0x58] sm:$0xff]
  %v522 = vld [vmem:[#allocation2 + $0x60] sm:$0xff]
  %v523 = vld [vmem:[#allocation2 + $0x68] sm:$0xff]
  %v524 = vld [vmem:[#allocation2 + $0x70] sm:$0xff]
  %v525 = vld [vmem:[#allocation2 + $0x78] sm:$0xff]
  %v526 = vld [vmem:[#allocation2 + $0x80] sm:$0xff]
  %v527 = vld [vmem:[#allocation2 + $0x88] sm:$0xff]
  %v528 = vld [vmem:[#allocation2 + $0x90] sm:$0xff]
  %v529 = vld [vmem:[#allocation2 + $0x98] sm:$0xff]
  %v530 = vld [vmem:[#allocation2 + $0xa0] sm:$0xff]
  %v531 = vld [vmem:[#allocation2 + $0xa8] sm:$0xff]
  %v532 = vld [vmem:[#allocation2 + $0xb0] sm:$0xff]
  %v533 = vld [vmem:[#allocation2 + $0xb8] sm:$0xff]
  %v534 = vld [vmem:[#allocation2 + $0xc0] sm:$0xff]
  %v535 = vld [vmem:[#allocation2 + $0xc8] sm:$0xff]
  %v536 = vld [vmem:[#allocation2 + $0xd0] sm:$0xff]
  %v537 = vld [vmem:[#allocation2 + $0xd8] sm:$0xff]
  %v538 = vld [vmem:[#allocation2 + $0xe0] sm:$0xff]
  %v539 = vld [vmem:[#allocation2 + $0xe8] sm:$0xff]
  %v540 = vld [vmem:[#allocation2 + $0xf0] sm:$0xff]
  %v541 = vld [vmem:[#allocation2 + $0xf8] sm:$0xff]
  %vm542 = vcmask 523264
  %v544 = vsel %vm542, %v502, 0
  %v547 = vsel %vm542, %v503, 0
  %v550 = vsel %vm542, %v504, 0
  %v553 = vsel %vm542, %v505, 0
  %v556 = vsel %vm542, %v506, 0
  %v559 = vsel %vm542, %v507, 0
  %v562 = vsel %vm542, %v508, 0
  %v565 = vsel %vm542, %v509, 0
  %567 = vmatprep.subr.mxu0 0.0
  %568 = vmatpush1.msra.mxu0 0.0
  %569 = vmatprep.subr.mxu0 0.0
  %570 = vmatpush1.msra.mxu0 0.0
  %571 = vmatprep.subr.mxu0 0.0
  %572 = vmatpush1.msra.mxu0 0.0
  %573 = vmatprep.subr.mxu0 0.0
  %574 = vmatpush1.msra.mxu0 0.0
  %575 = vmatprep.subr.mxu0 0.0
  %576 = vmatpush1.msra.mxu0 0.0
  %577 = vmatprep.subr.mxu0 0.0
  %578 = vmatpush1.msra.mxu0 0.0
  %579 = vmatprep.subr.mxu0 0.0
  %580 = vmatpush1.msra.mxu0 0.0
  %581 = vmatprep.subr.mxu0 0.0
  %582 = vmatpush1.msra.mxu0 0.0
  %583 = vmatprep.subr.mxu0 %v539
  %584 = vmatpush1.msra.mxu0 %v538
  %585 = vmatprep.subr.mxu0 %v535
  %586 = vmatpush1.msra.mxu0 %v534
  %587 = vmatprep.subr.mxu0 %v531
  %588 = vmatpush1.msra.mxu0 %v530
  %589 = vmatprep.subr.mxu0 %v527
  %590 = vmatpush1.msra.mxu0 %v526
  %591 = vmatprep.subr.mxu0 %v523
  %592 = vmatpush1.msra.mxu0 %v522
  %593 = vmatprep.subr.mxu0 %v519
  %594 = vmatpush1.msra.mxu0 %v518
  %595 = vmatprep.subr.mxu0 %v515
  %596 = vmatpush1.msra.mxu0 %v514
  %597 = vmatprep.subr.mxu0 %v511
  %598 = vmatpush1.msra.mxu0 %v510
  %599 = vmatprep.subr.mxu0 0.0
  %600 = vmatpush2.msra.mxu0 0.0
  %601 = vmatprep.subr.mxu0 0.0
  %602 = vmatpush2.msra.mxu0 0.0
  %603 = vmatprep.subr.mxu0 0.0
  %604 = vmatpush2.msra.mxu0 0.0
  %605 = vmatprep.subr.mxu0 0.0
  %606 = vmatpush2.msra.mxu0 0.0
  %607 = vmatprep.subr.mxu0 0.0
  %608 = vmatpush2.msra.mxu0 0.0
  %609 = vmatprep.subr.mxu0 0.0
  %610 = vmatpush2.msra.mxu0 0.0
  %611 = vmatprep.subr.mxu0 0.0
  %612 = vmatpush2.msra.mxu0 0.0
  %613 = vmatprep.subr.mxu0 0.0
  %614 = vmatpush2.msra.mxu0 0.0
  %615 = vmatprep.subr.mxu0 0.0
  %616 = vmatpush2.msra.mxu0 0.0
  %617 = vmatprep.subr.mxu0 0.0
  %618 = vmatpush2.msra.mxu0 0.0
  %619 = vmatprep.subr.mxu0 0.0
  %620 = vmatpush2.msra.mxu0 0.0
  %621 = vmatprep.subr.mxu0 0.0
  %622 = vmatpush2.msra.mxu0 0.0
  %623 = vmatprep.subr.mxu0 0.0
  %624 = vmatpush2.msra.mxu0 0.0
  %625 = vmatprep.subr.mxu0 0.0
  %626 = vmatpush2.msra.mxu0 0.0
  %627 = vmatprep.subr.mxu0 0.0
  %628 = vmatpush2.msra.mxu0 0.0
  %629 = vmatprep.subr.mxu0 0.0
  %630 = vmatpush2.msra.mxu0 0.0
  %631 = vmatprep.mubr.f32.mxu0 0.0
  %632 = vmatmul.mubr.f32.gmra.mxu0 %v544
  %v633 = vpop.f32.mrf.mxu0
  %v634 = vadd.f32 0.0, %v633
  %v635 = vpop.f32.mrf.mxu0
  %v636 = vadd.f32 0.0, %v635
  %637 = vmatprep.mubr.f32.mxu0 0.0
  %638 = vmatmul.mubr.f32.gmra.mxu0 %v547
  %v639 = vpop.f32.mrf.mxu0
  %v640 = vadd.f32 0.0, %v639
  %v641 = vpop.f32.mrf.mxu0
  %v642 = vadd.f32 0.0, %v641
  %643 = vmatprep.mubr.f32.mxu0 0.0
  %644 = vmatmul.mubr.f32.gmra.mxu0 %v550
  %v645 = vpop.f32.mrf.mxu0
  %v646 = vadd.f32 0.0, %v645
  %v647 = vpop.f32.mrf.mxu0
  %v648 = vadd.f32 0.0, %v647
  %649 = vmatprep.mubr.f32.mxu0 0.0
  %650 = vmatmul.mubr.f32.gmra.mxu0 %v553
  %v651 = vpop.f32.mrf.mxu0
  %v652 = vadd.f32 0.0, %v651
  %v653 = vpop.f32.mrf.mxu0
  %v654 = vadd.f32 0.0, %v653
  %655 = vmatprep.mubr.f32.mxu0 0.0
  %656 = vmatmul.mubr.f32.gmra.mxu0 %v556
  %v657 = vpop.f32.mrf.mxu0
  %v658 = vadd.f32 0.0, %v657
  %v659 = vpop.f32.mrf.mxu0
  %v660 = vadd.f32 0.0, %v659
  %661 = vmatprep.mubr.f32.mxu0 0.0
  %662 = vmatmul.mubr.f32.gmra.mxu0 %v559
  %v663 = vpop.f32.mrf.mxu0
  %v664 = vadd.f32 0.0, %v663
  %v665 = vpop.f32.mrf.mxu0
  %v666 = vadd.f32 0.0, %v665
  %667 = vmatprep.mubr.f32.mxu0 0.0
  %668 = vmatmul.mubr.f32.gmra.mxu0 %v562
  %v669 = vpop.f32.mrf.mxu0
  %v670 = vadd.f32 0.0, %v669
  %v671 = vpop.f32.mrf.mxu0
  %v672 = vadd.f32 0.0, %v671
  %673 = vmatprep.mubr.f32.mxu0 0.0
  %674 = vmatmul.mubr.f32.gmra.mxu0 %v565
  %v675 = vpop.f32.mrf.mxu0
  %v676 = vadd.f32 0.0, %v675
  %v677 = vpop.f32.mrf.mxu0
  %v678 = vadd.f32 0.0, %v677
  %679 = vdwg.mxu0
  %680 = vmatprep.subr.mxu0 0.0
  %681 = vmatpush1.msra.mxu0 0.0
  %682 = vmatprep.subr.mxu0 0.0
  %683 = vmatpush1.msra.mxu0 0.0
  %684 = vmatprep.subr.mxu0 0.0
  %685 = vmatpush1.msra.mxu0 0.0
  %686 = vmatprep.subr.mxu0 0.0
  %687 = vmatpush1.msra.mxu0 0.0
  %688 = vmatprep.subr.mxu0 0.0
  %689 = vmatpush1.msra.mxu0 0.0
  %690 = vmatprep.subr.mxu0 0.0
  %691 = vmatpush1.msra.mxu0 0.0
  %692 = vmatprep.subr.mxu0 0.0
  %693 = vmatpush1.msra.mxu0 0.0
  %694 = vmatprep.subr.mxu0 0.0
  %695 = vmatpush1.msra.mxu0 0.0
  %696 = vmatprep.subr.mxu0 %v541
  %697 = vmatpush1.msra.mxu0 %v540
  %698 = vmatprep.subr.mxu0 %v537
  %699 = vmatpush1.msra.mxu0 %v536
  %700 = vmatprep.subr.mxu0 %v533
  %701 = vmatpush1.msra.mxu0 %v532
  %702 = vmatprep.subr.mxu0 %v529
  %703 = vmatpush1.msra.mxu0 %v528
  %704 = vmatprep.subr.mxu0 %v525
  %705 = vmatpush1.msra.mxu0 %v524
  %706 = vmatprep.subr.mxu0 %v521
  %707 = vmatpush1.msra.mxu0 %v520
  %708 = vmatprep.subr.mxu0 %v517
  %709 = vmatpush1.msra.mxu0 %v516
  %710 = vmatprep.subr.mxu0 %v513
  %711 = vmatpush1.msra.mxu0 %v512
  %712 = vmatprep.subr.mxu0 0.0
  %713 = vmatpush2.msra.mxu0 0.0
  %714 = vmatprep.subr.mxu0 0.0
  %715 = vmatpush2.msra.mxu0 0.0
  %716 = vmatprep.subr.mxu0 0.0
  %717 = vmatpush2.msra.mxu0 0.0
  %718 = vmatprep.subr.mxu0 0.0
  %719 = vmatpush2.msra.mxu0 0.0
  %720 = vmatprep.subr.mxu0 0.0
  %721 = vmatpush2.msra.mxu0 0.0
  %722 = vmatprep.subr.mxu0 0.0
  %723 = vmatpush2.msra.mxu0 0.0
  %724 = vmatprep.subr.mxu0 0.0
  %725 = vmatpush2.msra.mxu0 0.0
  %726 = vmatprep.subr.mxu0 0.0
  %727 = vmatpush2.msra.mxu0 0.0
  %728 = vmatprep.subr.mxu0 0.0
  %729 = vmatpush2.msra.mxu0 0.0
  %730 = vmatprep.subr.mxu0 0.0
  %731 = vmatpush2.msra.mxu0 0.0
  %732 = vmatprep.subr.mxu0 0.0
  %733 = vmatpush2.msra.mxu0 0.0
  %734 = vmatprep.subr.mxu0 0.0
  %735 = vmatpush2.msra.mxu0 0.0
  %736 = vmatprep.subr.mxu0 0.0
  %737 = vmatpush2.msra.mxu0 0.0
  %738 = vmatprep.subr.mxu0 0.0
  %739 = vmatpush2.msra.mxu0 0.0
  %740 = vmatprep.subr.mxu0 0.0
  %741 = vmatpush2.msra.mxu0 0.0
  %742 = vmatprep.subr.mxu0 0.0
  %743 = vmatpush2.msra.mxu0 0.0
  %744 = vmatprep.mubr.f32.mxu0 0.0
  %745 = vmatmul.mubr.f32.gmra.mxu0 %v544
  %v746 = vpop.f32.mrf.mxu0
  %v747 = vadd.f32 0.0, %v746
  %v748 = vpop.f32.mrf.mxu0
  %v749 = vadd.f32 0.0, %v748
  %750 = vmatprep.mubr.f32.mxu0 0.0
  %751 = vmatmul.mubr.f32.gmra.mxu0 %v547
  %v752 = vpop.f32.mrf.mxu0
  %v753 = vadd.f32 0.0, %v752
  %v754 = vpop.f32.mrf.mxu0
  %v755 = vadd.f32 0.0, %v754
  %756 = vmatprep.mubr.f32.mxu0 0.0
  %757 = vmatmul.mubr.f32.gmra.mxu0 %v550
  %v758 = vpop.f32.mrf.mxu0
  %v759 = vadd.f32 0.0, %v758
  %v760 = vpop.f32.mrf.mxu0
  %v761 = vadd.f32 0.0, %v760
  %762 = vmatprep.mubr.f32.mxu0 0.0
  %763 = vmatmul.mubr.f32.gmra.mxu0 %v553
  %v764 = vpop.f32.mrf.mxu0
  %v765 = vadd.f32 0.0, %v764
  %v766 = vpop.f32.mrf.mxu0
  %v767 = vadd.f32 0.0, %v766
  %768 = vmatprep.mubr.f32.mxu0 0.0
  %769 = vmatmul.mubr.f32.gmra.mxu0 %v556
  %v770 = vpop.f32.mrf.mxu0
  %v771 = vadd.f32 0.0, %v770
  %v772 = vpop.f32.mrf.mxu0
  %v773 = vadd.f32 0.0, %v772
  %774 = vmatprep.mubr.f32.mxu0 0.0
  %775 = vmatmul.mubr.f32.gmra.mxu0 %v559
  %v776 = vpop.f32.mrf.mxu0
  %v777 = vadd.f32 0.0, %v776
  %v778 = vpop.f32.mrf.mxu0
  %v779 = vadd.f32 0.0, %v778
  %780 = vmatprep.mubr.f32.mxu0 0.0
  %781 = vmatmul.mubr.f32.gmra.mxu0 %v562
  %v782 = vpop.f32.mrf.mxu0
  %v783 = vadd.f32 0.0, %v782
  %v784 = vpop.f32.mrf.mxu0
  %v785 = vadd.f32 0.0, %v784
  %786 = vmatprep.mubr.f32.mxu0 0.0
  %787 = vmatmul.mubr.f32.gmra.mxu0 %v565
  %v788 = vpop.f32.mrf.mxu0
  %v789 = vadd.f32 0.0, %v788
  %v790 = vpop.f32.mrf.mxu0
  %v791 = vadd.f32 0.0, %v790
  %792 = vdwg.mxu0
  %793 = vst [vmem:[#allocation3] sm:$0xff] %v634
  %794 = vst [vmem:[#allocation3 + $0x8] sm:$0xff] %v636
  %795 = vst [vmem:[#allocation3 + $0x10] sm:$0xff] %v747
  %796 = vst [vmem:[#allocation3 + $0x18] sm:$0xff] %v749
  %797 = vst [vmem:[#allocation3 + $0x20] sm:$0xff] %v640
  %798 = vst [vmem:[#allocation3 + $0x28] sm:$0xff] %v642
  %799 = vst [vmem:[#allocation3 + $0x30] sm:$0xff] %v753
  %800 = vst [vmem:[#allocation3 + $0x38] sm:$0xff] %v755
  %801 = vst [vmem:[#allocation3 + $0x40] sm:$0xff] %v646
  %802 = vst [vmem:[#allocation3 + $0x48] sm:$0xff] %v648
  %803 = vst [vmem:[#allocation3 + $0x50] sm:$0xff] %v759
  %804 = vst [vmem:[#allocation3 + $0x58] sm:$0xff] %v761
  %805 = vst [vmem:[#allocation3 + $0x60] sm:$0xff] %v652
  %806 = vst [vmem:[#allocation3 + $0x68] sm:$0xff] %v654
  %807 = vst [vmem:[#allocation3 + $0x70] sm:$0xff] %v765
  %808 = vst [vmem:[#allocation3 + $0x78] sm:$0xff] %v767
  %809 = vst [vmem:[#allocation3 + $0x80] sm:$0xff] %v658
  %810 = vst [vmem:[#allocation3 + $0x88] sm:$0xff] %v660
  %811 = vst [vmem:[#allocation3 + $0x90] sm:$0xff] %v771
  %812 = vst [vmem:[#allocation3 + $0x98] sm:$0xff] %v773
  %813 = vst [vmem:[#allocation3 + $0xa0] sm:$0xff] %v664
  %814 = vst [vmem:[#allocation3 + $0xa8] sm:$0xff] %v666
  %815 = vst [vmem:[#allocation3 + $0xb0] sm:$0xff] %v777
  %816 = vst [vmem:[#allocation3 + $0xb8] sm:$0xff] %v779
  %817 = vst [vmem:[#allocation3 + $0xc0] sm:$0xff] %v670
  %818 = vst [vmem:[#allocation3 + $0xc8] sm:$0xff] %v672
  %819 = vst [vmem:[#allocation3 + $0xd0] sm:$0xff] %v783
  %820 = vst [vmem:[#allocation3 + $0xd8] sm:$0xff] %v785
  %821 = vst [vmem:[#allocation3 + $0xe0] sm:$0xff] %v676
  %822 = vst [vmem:[#allocation3 + $0xe8] sm:$0xff] %v678
  %823 = vst [vmem:[#allocation3 + $0xf0] sm:$0xff] %v789
  %824 = vst [vmem:[#allocation3 + $0xf8] sm:$0xff] %v791
  %v825 = vld [vmem:[%s6] sm:$0xff]
  %v826 = vld [vmem:[%s6 + $0x8] sm:$0xff]
  %v827 = vld [vmem:[%s6 + $0x10] sm:$0xff]
  %v828 = vld [vmem:[%s6 + $0x18] sm:$0xff]
  %v829 = vld [vmem:[%s6 + $0x20] sm:$0xff]
  %v830 = vld [vmem:[%s6 + $0x28] sm:$0xff]
  %v831 = vld [vmem:[%s6 + $0x30] sm:$0xff]
  %v832 = vld [vmem:[%s6 + $0x38] sm:$0xff]
  %v833 = vld [vmem:[%s6 + $0x40] sm:$0xff]
  %v834 = vld [vmem:[%s6 + $0x48] sm:$0xff]
  %v835 = vld [vmem:[%s6 + $0x50] sm:$0xff]
  %v836 = vld [vmem:[%s6 + $0x58] sm:$0xff]
  %v837 = vld [vmem:[%s6 + $0x60] sm:$0xff]
  %v838 = vld [vmem:[%s6 + $0x68] sm:$0xff]
  %v839 = vld [vmem:[%s6 + $0x70] sm:$0xff]
  %v840 = vld [vmem:[%s6 + $0x78] sm:$0xff]
  %v841 = vld [vmem:[%s6 + $0x80] sm:$0xff]
  %v842 = vld [vmem:[%s6 + $0x88] sm:$0xff]
  %v843 = vld [vmem:[%s6 + $0x90] sm:$0xff]
  %v844 = vld [vmem:[%s6 + $0x98] sm:$0xff]
  %v845 = vld [vmem:[%s6 + $0xa0] sm:$0xff]
  %v846 = vld [vmem:[%s6 + $0xa8] sm:$0xff]
  %v847 = vld [vmem:[%s6 + $0xb0] sm:$0xff]
  %v848 = vld [vmem:[%s6 + $0xb8] sm:$0xff]
  %v849 = vld [vmem:[%s6 + $0xc0] sm:$0xff]
  %v850 = vld [vmem:[%s6 + $0xc8] sm:$0xff]
  %v851 = vld [vmem:[%s6 + $0xd0] sm:$0xff]
  %v852 = vld [vmem:[%s6 + $0xd8] sm:$0xff]
  %v853 = vld [vmem:[%s6 + $0xe0] sm:$0xff]
  %v854 = vld [vmem:[%s6 + $0xe8] sm:$0xff]
  %v855 = vld [vmem:[%s6 + $0xf0] sm:$0xff]
  %v856 = vld [vmem:[%s6 + $0xf8] sm:$0xff]
  %v857 = vld [vmem:[%s1] sm:$0xff]
  %v858 = vld [vmem:[%s2] sm:$0xff]
  %v859 = vld [vmem:[#allocation3] sm:$0xff]
  %v860 = vld [vmem:[#allocation3 + $0x8] sm:$0xff]
  %v861 = vld [vmem:[#allocation3 + $0x10] sm:$0xff]
  %v862 = vld [vmem:[#allocation3 + $0x18] sm:$0xff]
  %v863 = vpack.c.bf16 %v857, %v857
  %v896 = vunpack.c.l.b16 %v825
  %v897 = vunpack.c.h.b16 %v825
  %v898 = vunpack.c.l.b16 %v826
  %v899 = vunpack.c.h.b16 %v826
  %v900 = vunpack.c.l.b16 %v827
  %v901 = vunpack.c.h.b16 %v827
  %v902 = vunpack.c.l.b16 %v828
  %v903 = vunpack.c.h.b16 %v828
  %v904 = vunpack.c.l.b16 %v829
  %v905 = vunpack.c.h.b16 %v829
  %v906 = vunpack.c.l.b16 %v830
  %v907 = vunpack.c.h.b16 %v830
  %v908 = vunpack.c.l.b16 %v831
  %v909 = vunpack.c.h.b16 %v831
  %v910 = vunpack.c.l.b16 %v832
  %v911 = vunpack.c.h.b16 %v832
  %v912 = vunpack.c.l.b16 %v833
  %v913 = vunpack.c.h.b16 %v833
  %v914 = vunpack.c.l.b16 %v834
  %v915 = vunpack.c.h.b16 %v834
  %v916 = vunpack.c.l.b16 %v835
  %v917 = vunpack.c.h.b16 %v835
  %v918 = vunpack.c.l.b16 %v836
  %v919 = vunpack.c.h.b16 %v836
  %v920 = vunpack.c.l.b16 %v837
  %v921 = vunpack.c.h.b16 %v837
  %v922 = vunpack.c.l.b16 %v838
  %v923 = vunpack.c.h.b16 %v838
  %v924 = vunpack.c.l.b16 %v839
  %v925 = vunpack.c.h.b16 %v839
  %v926 = vunpack.c.l.b16 %v840
  %v927 = vunpack.c.h.b16 %v840
  %v928 = vunpack.c.l.b16 %v841
  %v929 = vunpack.c.h.b16 %v841
  %v930 = vunpack.c.l.b16 %v842
  %v931 = vunpack.c.h.b16 %v842
  %v932 = vunpack.c.l.b16 %v843
  %v933 = vunpack.c.h.b16 %v843
  %v934 = vunpack.c.l.b16 %v844
  %v935 = vunpack.c.h.b16 %v844
  %v936 = vunpack.c.l.b16 %v845
  %v937 = vunpack.c.h.b16 %v845
  %v938 = vunpack.c.l.b16 %v846
  %v939 = vunpack.c.h.b16 %v846
  %v940 = vunpack.c.l.b16 %v847
  %v941 = vunpack.c.h.b16 %v847
  %v942 = vunpack.c.l.b16 %v848
  %v943 = vunpack.c.h.b16 %v848
  %v944 = vunpack.c.l.b16 %v849
  %v945 = vunpack.c.h.b16 %v849
  %v946 = vunpack.c.l.b16 %v850
  %v947 = vunpack.c.h.b16 %v850
  %v948 = vunpack.c.l.b16 %v851
  %v949 = vunpack.c.h.b16 %v851
  %v950 = vunpack.c.l.b16 %v852
  %v951 = vunpack.c.h.b16 %v852
  %v952 = vunpack.c.l.b16 %v853
  %v953 = vunpack.c.h.b16 %v853
  %v954 = vunpack.c.l.b16 %v854
  %v955 = vunpack.c.h.b16 %v854
  %v956 = vunpack.c.l.b16 %v855
  %v957 = vunpack.c.h.b16 %v855
  %v958 = vunpack.c.l.b16 %v856
  %v959 = vunpack.c.h.b16 %v856
  %v960 = vpack.c.b16 %v900, %v896
  %v961 = vpack.c.b16 %v901, %v897
  %v962 = vpack.c.b16 %v902, %v898
  %v963 = vpack.c.b16 %v903, %v899
  %v964 = vpack.c.b16 %v908, %v904
  %v965 = vpack.c.b16 %v909, %v905
  %v966 = vpack.c.b16 %v910, %v906
  %v967 = vpack.c.b16 %v911, %v907
  %v968 = vpack.c.b16 %v916, %v912
  %v969 = vpack.c.b16 %v917, %v913
  %v970 = vpack.c.b16 %v918, %v914
  %v971 = vpack.c.b16 %v919, %v915
  %v972 = vpack.c.b16 %v924, %v920
  %v973 = vpack.c.b16 %v925, %v921
  %v974 = vpack.c.b16 %v926, %v922
  %v975 = vpack.c.b16 %v927, %v923
  %v976 = vpack.c.b16 %v932, %v928
  %v977 = vpack.c.b16 %v933, %v929
  %v978 = vpack.c.b16 %v934, %v930
  %v979 = vpack.c.b16 %v935, %v931
  %v980 = vpack.c.b16 %v940, %v936
  %v981 = vpack.c.b16 %v941, %v937
  %v982 = vpack.c.b16 %v942, %v938
  %v983 = vpack.c.b16 %v943, %v939
  %v984 = vpack.c.b16 %v948, %v944
  %v985 = vpack.c.b16 %v949, %v945
  %v986 = vpack.c.b16 %v950, %v946
  %v987 = vpack.c.b16 %v951, %v947
  %v988 = vpack.c.b16 %v956, %v952
  %v989 = vpack.c.b16 %v957, %v953
  %v990 = vpack.c.b16 %v958, %v954
  %v991 = vpack.c.b16 %v959, %v955
  %1024 = vmatprep.subr.bf16.mxu0 %v989
  %1025 = vmatpush1.bf16.msra.mxu0 %v988
  %1026 = vmatprep.subr.bf16.mxu0 %v985
  %1027 = vmatpush1.bf16.msra.mxu0 %v984
  %1028 = vmatprep.subr.bf16.mxu0 %v981
  %1029 = vmatpush1.bf16.msra.mxu0 %v980
  %1030 = vmatprep.subr.bf16.mxu0 %v977
  %1031 = vmatpush1.bf16.msra.mxu0 %v976
  %1032 = vmatprep.subr.bf16.mxu0 %v973
  %1033 = vmatpush1.bf16.msra.mxu0 %v972
  %1034 = vmatprep.subr.bf16.mxu0 %v969
  %1035 = vmatpush1.bf16.msra.mxu0 %v968
  %1036 = vmatprep.subr.bf16.mxu0 %v965
  %1037 = vmatpush1.bf16.msra.mxu0 %v964
  %1038 = vmatprep.subr.bf16.mxu0 %v961
  %1039 = vmatpush1.bf16.msra.mxu0 %v960
  %1040 = vmatprep.subr.bf16.mxu0 0
  %1041 = vmatpush2.bf16.msra.mxu0 0
  %1042 = vmatprep.subr.bf16.mxu0 0
  %1043 = vmatpush2.bf16.msra.mxu0 0
  %1044 = vmatprep.subr.bf16.mxu0 0
  %1045 = vmatpush2.bf16.msra.mxu0 0
  %1046 = vmatprep.subr.bf16.mxu0 0
  %1047 = vmatpush2.bf16.msra.mxu0 0
  %1048 = vmatprep.subr.bf16.mxu0 0
  %1049 = vmatpush2.bf16.msra.mxu0 0
  %1050 = vmatprep.subr.bf16.mxu0 0
  %1051 = vmatpush2.bf16.msra.mxu0 0
  %1052 = vmatprep.subr.bf16.mxu0 0
  %1053 = vmatpush2.bf16.msra.mxu0 0
  %1054 = vmatprep.subr.bf16.mxu0 0
  %1055 = vmatpush2.bf16.msra.mxu0 0
  %1056 = vmatprep.mubr.bf16.mxu0 0
  %1057 = vmatmul.mubr.bf16.gmra.mxu0 %v863
  %v1058 = vpop.f32.mrf.mxu0
  %v1059 = vadd.f32 0.0, %v1058
  %v1060 = vpop.f32.mrf.mxu0
  %v1061 = vadd.f32 0.0, %v1060
  %v1062 = vpop.f32.mrf.mxu0
  %v1063 = vpop.f32.mrf.mxu0
  %1064 = vdwg.mxu0
  %1065 = vmatprep.subr.bf16.mxu0 %v991
  %1066 = vmatpush1.bf16.msra.mxu0 %v990
  %1067 = vmatprep.subr.bf16.mxu0 %v987
  %1068 = vmatpush1.bf16.msra.mxu0 %v986
  %1069 = vmatprep.subr.bf16.mxu0 %v983
  %1070 = vmatpush1.bf16.msra.mxu0 %v982
  %1071 = vmatprep.subr.bf16.mxu0 %v979
  %1072 = vmatpush1.bf16.msra.mxu0 %v978
  %1073 = vmatprep.subr.bf16.mxu0 %v975
  %1074 = vmatpush1.bf16.msra.mxu0 %v974
  %1075 = vmatprep.subr.bf16.mxu0 %v971
  %1076 = vmatpush1.bf16.msra.mxu0 %v970
  %1077 = vmatprep.subr.bf16.mxu0 %v967
  %1078 = vmatpush1.bf16.msra.mxu0 %v966
  %1079 = vmatprep.subr.bf16.mxu0 %v963
  %1080 = vmatpush1.bf16.msra.mxu0 %v962
  %1081 = vmatprep.subr.bf16.mxu0 0
  %1082 = vmatpush2.bf16.msra.mxu0 0
  %1083 = vmatprep.subr.bf16.mxu0 0
  %1084 = vmatpush2.bf16.msra.mxu0 0
  %1085 = vmatprep.subr.bf16.mxu0 0
  %1086 = vmatpush2.bf16.msra.mxu0 0
  %1087 = vmatprep.subr.bf16.mxu0 0
  %1088 = vmatpush2.bf16.msra.mxu0 0
  %1089 = vmatprep.subr.bf16.mxu0 0
  %1090 = vmatpush2.bf16.msra.mxu0 0
  %1091 = vmatprep.subr.bf16.mxu0 0
  %1092 = vmatpush2.bf16.msra.mxu0 0
  %1093 = vmatprep.subr.bf16.mxu0 0
  %1094 = vmatpush2.bf16.msra.mxu0 0
  %1095 = vmatprep.subr.bf16.mxu0 0
  %1096 = vmatpush2.bf16.msra.mxu0 0
  %1097 = vmatprep.mubr.bf16.mxu0 0
  %1098 = vmatmul.mubr.bf16.gmra.mxu0 %v863
  %v1099 = vpop.f32.mrf.mxu0
  %v1100 = vadd.f32 0.0, %v1099
  %v1101 = vpop.f32.mrf.mxu0
  %v1102 = vadd.f32 0.0, %v1101
  %v1103 = vpop.f32.mrf.mxu0
  %v1104 = vpop.f32.mrf.mxu0
  %1105 = vdwg.mxu0
  %v1106 = vadd.f32 %v859, %v1059
  %v1107 = vadd.f32 %v860, %v1061
  %v1108 = vadd.f32 %v861, %v1100
  %v1109 = vadd.f32 %v862, %v1102
  %v1110 = vxor.u32 %v1106, 2147483648
  %v1111 = vxor.u32 %v1107, 2147483648
  %v1112 = vxor.u32 %v1108, 2147483648
  %v1113 = vmul.f32 %v1110, 1.442695
  %v1114 = vpow.pop %v1113
  %v1115 = vmul.f32 %v1111, 1.442695
  %v1116 = vpow.pop %v1115
  %v1117 = vmul.f32 %v1112, 1.442695
  %v1118 = vpow.pop %v1117
  %v1119 = vadd.f32 %v1114, 1.0
  %v1120 = vadd.f32 %v1116, 1.0
  %v1121 = vadd.f32 %v1118, 1.0
  %v1122 = vrcp.pop %v1119
  %v1123 = vmul.f32 1.0, %v1122
  %v1124 = vrcp.pop %v1120
  %v1125 = vmul.f32 1.0, %v1124
  %v1126 = vrcp.pop %v1121
  %v1127 = vmul.f32 1.0, %v1126
  %v1128 = vtanh.pop %v1109
  %v1129 = vmul.f32 %v1125, %v858
  %v1130 = vmul.f32 %v1123, %v1128
  %v1131 = vadd.f32 %v1129, %v1130
  %v1132 = vtanh.pop %v1131
  %v1133 = vmul.f32 %v1127, %v1132
  %1134 = vst [vmem:[#allocation4] sm:$0xff] %v1133
  %v1135 = vld [vmem:[#allocation3 + $0x20] sm:$0xff]
  %v1136 = vld [vmem:[#allocation3 + $0x28] sm:$0xff]
  %v1137 = vld [vmem:[#allocation3 + $0x30] sm:$0xff]
  %v1138 = vld [vmem:[#allocation3 + $0x38] sm:$0xff]
  %v1139 = vpack.c.bf16 %v1133, %v1133
  %1140 = vmatprep.subr.bf16.mxu0 %v989
  %1141 = vmatpush1.bf16.msra.mxu0 %v988
  %1142 = vmatprep.subr.bf16.mxu0 %v985
  %1143 = vmatpush1.bf16.msra.mxu0 %v984
  %1144 = vmatprep.subr.bf16.mxu0 %v981
  %1145 = vmatpush1.bf16.msra.mxu0 %v980
  %1146 = vmatprep.subr.bf16.mxu0 %v977
  %1147 = vmatpush1.bf16.msra.mxu0 %v976
  %1148 = vmatprep.subr.bf16.mxu0 %v973
  %1149 = vmatpush1.bf16.msra.mxu0 %v972
  %1150 = vmatprep.subr.bf16.mxu0 %v969
  %1151 = vmatpush1.bf16.msra.mxu0 %v968
  %1152 = vmatprep.subr.bf16.mxu0 %v965
  %1153 = vmatpush1.bf16.msra.mxu0 %v964
  %1154 = vmatprep.subr.bf16.mxu0 %v961
  %1155 = vmatpush1.bf16.msra.mxu0 %v960
  %1156 = vmatprep.subr.bf16.mxu0 0
  %1157 = vmatpush2.bf16.msra.mxu0 0
  %1158 = vmatprep.subr.bf16.mxu0 0
  %1159 = vmatpush2.bf16.msra.mxu0 0
  %1160 = vmatprep.subr.bf16.mxu0 0
  %1161 = vmatpush2.bf16.msra.mxu0 0
  %1162 = vmatprep.subr.bf16.mxu0 0
  %1163 = vmatpush2.bf16.msra.mxu0 0
  %1164 = vmatprep.subr.bf16.mxu0 0
  %1165 = vmatpush2.bf16.msra.mxu0 0
  %1166 = vmatprep.subr.bf16.mxu0 0
  %1167 = vmatpush2.bf16.msra.mxu0 0
  %1168 = vmatprep.subr.bf16.mxu0 0
  %1169 = vmatpush2.bf16.msra.mxu0 0
  %1170 = vmatprep.subr.bf16.mxu0 0
  %1171 = vmatpush2.bf16.msra.mxu0 0
  %1172 = vmatprep.mubr.bf16.mxu0 0
  %1173 = vmatmul.mubr.bf16.gmra.mxu0 %v1139
  %v1174 = vpop.f32.mrf.mxu0
  %v1175 = vadd.f32 0.0, %v1174
  %v1176 = vpop.f32.mrf.mxu0
  %v1177 = vadd.f32 0.0, %v1176
  %v1178 = vpop.f32.mrf.mxu0
  %v1179 = vpop.f32.mrf.mxu0
  %1180 = vdwg.mxu0
  %1181 = vmatprep.subr.bf16.mxu0 %v991
  %1182 = vmatpush1.bf16.msra.mxu0 %v990
  %1183 = vmatprep.subr.bf16.mxu0 %v987
  %1184 = vmatpush1.bf16.msra.mxu0 %v986
  %1185 = vmatprep.subr.bf16.mxu0 %v983
  %1186 = vmatpush1.bf16.msra.mxu0 %v982
  %1187 = vmatprep.subr.bf16.mxu0 %v979
  %1188 = vmatpush1.bf16.msra.mxu0 %v978
  %1189 = vmatprep.subr.bf16.mxu0 %v975
  %1190 = vmatpush1.bf16.msra.mxu0 %v974
  %1191 = vmatprep.subr.bf16.mxu0 %v971
  %1192 = vmatpush1.bf16.msra.mxu0 %v970
  %1193 = vmatprep.subr.bf16.mxu0 %v967
  %1194 = vmatpush1.bf16.msra.mxu0 %v966
  %1195 = vmatprep.subr.bf16.mxu0 %v963
  %1196 = vmatpush1.bf16.msra.mxu0 %v962
  %1197 = vmatprep.subr.bf16.mxu0 0
  %1198 = vmatpush2.bf16.msra.mxu0 0
  %1199 = vmatprep.subr.bf16.mxu0 0
  %1200 = vmatpush2.bf16.msra.mxu0 0
  %1201 = vmatprep.subr.bf16.mxu0 0
  %1202 = vmatpush2.bf16.msra.mxu0 0
  %1203 = vmatprep.subr.bf16.mxu0 0
  %1204 = vmatpush2.bf16.msra.mxu0 0
  %1205 = vmatprep.subr.bf16.mxu0 0
  %1206 = vmatpush2.bf16.msra.mxu0 0
  %1207 = vmatprep.subr.bf16.mxu0 0
  %1208 = vmatpush2.bf16.msra.mxu0 0
  %1209 = vmatprep.subr.bf16.mxu0 0
  %1210 = vmatpush2.bf16.msra.mxu0 0
  %1211 = vmatprep.subr.bf16.mxu0 0
  %1212 = vmatpush2.bf16.msra.mxu0 0
  %1213 = vmatprep.mubr.bf16.mxu0 0
  %1214 = vmatmul.mubr.bf16.gmra.mxu0 %v1139
  %v1215 = vpop.f32.mrf.mxu0
  %v1216 = vadd.f32 0.0, %v1215
  %v1217 = vpop.f32.mrf.mxu0
  %v1218 = vadd.f32 0.0, %v1217
  %v1219 = vpop.f32.mrf.mxu0
  %v1220 = vpop.f32.mrf.mxu0
  %1221 = vdwg.mxu0
  %v1222 = vadd.f32 %v1135, %v1175
  %v1223 = vadd.f32 %v1136, %v1177
  %v1224 = vadd.f32 %v1137, %v1216
  %v1225 = vadd.f32 %v1138, %v1218
  %v1226 = vxor.u32 %v1222, 2147483648
  %v1227 = vxor.u32 %v1223, 2147483648
  %v1228 = vxor.u32 %v1224, 2147483648
  %v1229 = vmul.f32 %v1226, 1.442695
  %v1230 = vpow.pop %v1229
  %v1231 = vmul.f32 %v1227, 1.442695
  %v1232 = vpow.pop %v1231
  %v1233 = vmul.f32 %v1228, 1.442695
  %v1234 = vpow.pop %v1233
  %v1235 = vadd.f32 %v1230, 1.0
  %v1236 = vadd.f32 %v1232, 1.0
  %v1237 = vadd.f32 %v1234, 1.0
  %v1238 = vrcp.pop %v1235
  %v1239 = vmul.f32 1.0, %v1238
  %v1240 = vrcp.pop %v1236
  %v1241 = vmul.f32 1.0, %v1240
  %v1242 = vrcp.pop %v1237
  %v1243 = vmul.f32 1.0, %v1242
  %v1244 = vtanh.pop %v1225
  %v1245 = vmul.f32 %v1241, %v1131
  %v1246 = vmul.f32 %v1239, %v1244
  %v1247 = vadd.f32 %v1245, %v1246
  %v1248 = vtanh.pop %v1247
  %v1249 = vmul.f32 %v1243, %v1248
  %1250 = vst [vmem:[#allocation4 + $0x8] sm:$0xff] %v1249
  %v1251 = vld [vmem:[#allocation3 + $0x40] sm:$0xff]
  %v1252 = vld [vmem:[#allocation3 + $0x48] sm:$0xff]
  %v1253 = vld [vmem:[#allocation3 + $0x50] sm:$0xff]
  %v1254 = vld [vmem:[#allocation3 + $0x58] sm:$0xff]
  %v1255 = vpack.c.bf16 %v1249, %v1249
  %1256 = vmatprep.subr.bf16.mxu0 %v989
  %1257 = vmatpush1.bf16.msra.mxu0 %v988
  %1258 = vmatprep.subr.bf16.mxu0 %v985
  %1259 = vmatpush1.bf16.msra.mxu0 %v984
  %1260 = vmatprep.subr.bf16.mxu0 %v981
  %1261 = vmatpush1.bf16.msra.mxu0 %v980
  %1262 = vmatprep.subr.bf16.mxu0 %v977
  %1263 = vmatpush1.bf16.msra.mxu0 %v976
  %1264 = vmatprep.subr.bf16.mxu0 %v973
  %1265 = vmatpush1.bf16.msra.mxu0 %v972
  %1266 = vmatprep.subr.bf16.mxu0 %v969
  %1267 = vmatpush1.bf16.msra.mxu0 %v968
  %1268 = vmatprep.subr.bf16.mxu0 %v965
  %1269 = vmatpush1.bf16.msra.mxu0 %v964
  %1270 = vmatprep.subr.bf16.mxu0 %v961
  %1271 = vmatpush1.bf16.msra.mxu0 %v960
  %1272 = vmatprep.subr.bf16.mxu0 0
  %1273 = vmatpush2.bf16.msra.mxu0 0
  %1274 = vmatprep.subr.bf16.mxu0 0
  %1275 = vmatpush2.bf16.msra.mxu0 0
  %1276 = vmatprep.subr.bf16.mxu0 0
  %1277 = vmatpush2.bf16.msra.mxu0 0
  %1278 = vmatprep.subr.bf16.mxu0 0
  %1279 = vmatpush2.bf16.msra.mxu0 0
  %1280 = vmatprep.subr.bf16.mxu0 0
  %1281 = vmatpush2.bf16.msra.mxu0 0
  %1282 = vmatprep.subr.bf16.mxu0 0
  %1283 = vmatpush2.bf16.msra.mxu0 0
  %1284 = vmatprep.subr.bf16.mxu0 0
  %1285 = vmatpush2.bf16.msra.mxu0 0
  %1286 = vmatprep.subr.bf16.mxu0 0
  %1287 = vmatpush2.bf16.msra.mxu0 0
  %1288 = vmatprep.mubr.bf16.mxu0 0
  %1289 = vmatmul.mubr.bf16.gmra.mxu0 %v1255
  %v1290 = vpop.f32.mrf.mxu0
  %v1291 = vadd.f32 0.0, %v1290
  %v1292 = vpop.f32.mrf.mxu0
  %v1293 = vadd.f32 0.0, %v1292
  %v1294 = vpop.f32.mrf.mxu0
  %v1295 = vpop.f32.mrf.mxu0
  %1296 = vdwg.mxu0
  %1297 = vmatprep.subr.bf16.mxu0 %v991
  %1298 = vmatpush1.bf16.msra.mxu0 %v990
  %1299 = vmatprep.subr.bf16.mxu0 %v987
  %1300 = vmatpush1.bf16.msra.mxu0 %v986
  %1301 = vmatprep.subr.bf16.mxu0 %v983
  %1302 = vmatpush1.bf16.msra.mxu0 %v982
  %1303 = vmatprep.subr.bf16.mxu0 %v979
  %1304 = vmatpush1.bf16.msra.mxu0 %v978
  %1305 = vmatprep.subr.bf16.mxu0 %v975
  %1306 = vmatpush1.bf16.msra.mxu0 %v974
  %1307 = vmatprep.subr.bf16.mxu0 %v971
  %1308 = vmatpush1.bf16.msra.mxu0 %v970
  %1309 = vmatprep.subr.bf16.mxu0 %v967
  %1310 = vmatpush1.bf16.msra.mxu0 %v966
  %1311 = vmatprep.subr.bf16.mxu0 %v963
  %1312 = vmatpush1.bf16.msra.mxu0 %v962
  %1313 = vmatprep.subr.bf16.mxu0 0
  %1314 = vmatpush2.bf16.msra.mxu0 0
  %1315 = vmatprep.subr.bf16.mxu0 0
  %1316 = vmatpush2.bf16.msra.mxu0 0
  %1317 = vmatprep.subr.bf16.mxu0 0
  %1318 = vmatpush2.bf16.msra.mxu0 0
  %1319 = vmatprep.subr.bf16.mxu0 0
  %1320 = vmatpush2.bf16.msra.mxu0 0
  %1321 = vmatprep.subr.bf16.mxu0 0
  %1322 = vmatpush2.bf16.msra.mxu0 0
  %1323 = vmatprep.subr.bf16.mxu0 0
  %1324 = vmatpush2.bf16.msra.mxu0 0
  %1325 = vmatprep.subr.bf16.mxu0 0
  %1326 = vmatpush2.bf16.msra.mxu0 0
  %1327 = vmatprep.subr.bf16.mxu0 0
  %1328 = vmatpush2.bf16.msra.mxu0 0
  %1329 = vmatprep.mubr.bf16.mxu0 0
  %1330 = vmatmul.mubr.bf16.gmra.mxu0 %v1255
  %v1331 = vpop.f32.mrf.mxu0
  %v1332 = vadd.f32 0.0, %v1331
  %v1333 = vpop.f32.mrf.mxu0
  %v1334 = vadd.f32 0.0, %v1333
  %v1335 = vpop.f32.mrf.mxu0
  %v1336 = vpop.f32.mrf.mxu0
  %1337 = vdwg.mxu0
  %v1338 = vadd.f32 %v1251, %v1291
  %v1339 = vadd.f32 %v1252, %v1293
  %v1340 = vadd.f32 %v1253, %v1332
  %v1341 = vadd.f32 %v1254, %v1334
  %v1342 = vxor.u32 %v1338, 2147483648
  %v1343 = vxor.u32 %v1339, 2147483648
  %v1344 = vxor.u32 %v1340, 2147483648
  %v1345 = vmul.f32 %v1342, 1.442695
  %v1346 = vpow.pop %v1345
  %v1347 = vmul.f32 %v1343, 1.442695
  %v1348 = vpow.pop %v1347
  %v1349 = vmul.f32 %v1344, 1.442695
  %v1350 = vpow.pop %v1349
  %v1351 = vadd.f32 %v1346, 1.0
  %v1352 = vadd.f32 %v1348, 1.0
  %v1353 = vadd.f32 %v1350, 1.0
  %v1354 = vrcp.pop %v1351
  %v1355 = vmul.f32 1.0, %v1354
  %v1356 = vrcp.pop %v1352
  %v1357 = vmul.f32 1.0, %v1356
  %v1358 = vrcp.pop %v1353
  %v1359 = vmul.f32 1.0, %v1358
  %v1360 = vtanh.pop %v1341
  %v1361 = vmul.f32 %v1357, %v1247
  %v1362 = vmul.f32 %v1355, %v1360
  %v1363 = vadd.f32 %v1361, %v1362
  %v1364 = vtanh.pop %v1363
  %v1365 = vmul.f32 %v1359, %v1364
  %1366 = vst [vmem:[#allocation4 + $0x10] sm:$0xff] %v1365
  %v1367 = vld [vmem:[#allocation3 + $0x60] sm:$0xff]
  %v1368 = vld [vmem:[#allocation3 + $0x68] sm:$0xff]
  %v1369 = vld [vmem:[#allocation3 + $0x70] sm:$0xff]
  %v1370 = vld [vmem:[#allocation3 + $0x78] sm:$0xff]
  %v1371 = vpack.c.bf16 %v1365, %v1365
  %1372 = vmatprep.subr.bf16.mxu0 %v989
  %1373 = vmatpush1.bf16.msra.mxu0 %v988
  %1374 = vmatprep.subr.bf16.mxu0 %v985
  %1375 = vmatpush1.bf16.msra.mxu0 %v984
  %1376 = vmatprep.subr.bf16.mxu0 %v981
  %1377 = vmatpush1.bf16.msra.mxu0 %v980
  %1378 = vmatprep.subr.bf16.mxu0 %v977
  %1379 = vmatpush1.bf16.msra.mxu0 %v976
  %1380 = vmatprep.subr.bf16.mxu0 %v973
  %1381 = vmatpush1.bf16.msra.mxu0 %v972
  %1382 = vmatprep.subr.bf16.mxu0 %v969
  %1383 = vmatpush1.bf16.msra.mxu0 %v968
  %1384 = vmatprep.subr.bf16.mxu0 %v965
  %1385 = vmatpush1.bf16.msra.mxu0 %v964
  %1386 = vmatprep.subr.bf16.mxu0 %v961
  %1387 = vmatpush1.bf16.msra.mxu0 %v960
  %1388 = vmatprep.subr.bf16.mxu0 0
  %1389 = vmatpush2.bf16.msra.mxu0 0
  %1390 = vmatprep.subr.bf16.mxu0 0
  %1391 = vmatpush2.bf16.msra.mxu0 0
  %1392 = vmatprep.subr.bf16.mxu0 0
  %1393 = vmatpush2.bf16.msra.mxu0 0
  %1394 = vmatprep.subr.bf16.mxu0 0
  %1395 = vmatpush2.bf16.msra.mxu0 0
  %1396 = vmatprep.subr.bf16.mxu0 0
  %1397 = vmatpush2.bf16.msra.mxu0 0
  %1398 = vmatprep.subr.bf16.mxu0 0
  %1399 = vmatpush2.bf16.msra.mxu0 0
  %1400 = vmatprep.subr.bf16.mxu0 0
  %1401 = vmatpush2.bf16.msra.mxu0 0
  %1402 = vmatprep.subr.bf16.mxu0 0
  %1403 = vmatpush2.bf16.msra.mxu0 0
  %1404 = vmatprep.mubr.bf16.mxu0 0
  %1405 = vmatmul.mubr.bf16.gmra.mxu0 %v1371
  %v1406 = vpop.f32.mrf.mxu0
  %v1407 = vadd.f32 0.0, %v1406
  %v1408 = vpop.f32.mrf.mxu0
  %v1409 = vadd.f32 0.0, %v1408
  %v1410 = vpop.f32.mrf.mxu0
  %v1411 = vpop.f32.mrf.mxu0
  %1412 = vdwg.mxu0
  %1413 = vmatprep.subr.bf16.mxu0 %v991
  %1414 = vmatpush1.bf16.msra.mxu0 %v990
  %1415 = vmatprep.subr.bf16.mxu0 %v987
  %1416 = vmatpush1.bf16.msra.mxu0 %v986
  %1417 = vmatprep.subr.bf16.mxu0 %v983
  %1418 = vmatpush1.bf16.msra.mxu0 %v982
  %1419 = vmatprep.subr.bf16.mxu0 %v979
  %1420 = vmatpush1.bf16.msra.mxu0 %v978
  %1421 = vmatprep.subr.bf16.mxu0 %v975
  %1422 = vmatpush1.bf16.msra.mxu0 %v974
  %1423 = vmatprep.subr.bf16.mxu0 %v971
  %1424 = vmatpush1.bf16.msra.mxu0 %v970
  %1425 = vmatprep.subr.bf16.mxu0 %v967
  %1426 = vmatpush1.bf16.msra.mxu0 %v966
  %1427 = vmatprep.subr.bf16.mxu0 %v963
  %1428 = vmatpush1.bf16.msra.mxu0 %v962
  %1429 = vmatprep.subr.bf16.mxu0 0
  %1430 = vmatpush2.bf16.msra.mxu0 0
  %1431 = vmatprep.subr.bf16.mxu0 0
  %1432 = vmatpush2.bf16.msra.mxu0 0
  %1433 = vmatprep.subr.bf16.mxu0 0
  %1434 = vmatpush2.bf16.msra.mxu0 0
  %1435 = vmatprep.subr.bf16.mxu0 0
  %1436 = vmatpush2.bf16.msra.mxu0 0
  %1437 = vmatprep.subr.bf16.mxu0 0
  %1438 = vmatpush2.bf16.msra.mxu0 0
  %1439 = vmatprep.subr.bf16.mxu0 0
  %1440 = vmatpush2.bf16.msra.mxu0 0
  %1441 = vmatprep.subr.bf16.mxu0 0
  %1442 = vmatpush2.bf16.msra.mxu0 0
  %1443 = vmatprep.subr.bf16.mxu0 0
  %1444 = vmatpush2.bf16.msra.mxu0 0
  %1445 = vmatprep.mubr.bf16.mxu0 0
  %1446 = vmatmul.mubr.bf16.gmra.mxu0 %v1371
  %v1447 = vpop.f32.mrf.mxu0
  %v1448 = vadd.f32 0.0, %v1447
  %v1449 = vpop.f32.mrf.mxu0
  %v1450 = vadd.f32 0.0, %v1449
  %v1451 = vpop.f32.mrf.mxu0
  %v1452 = vpop.f32.mrf.mxu0
  %1453 = vdwg.mxu0
  %v1454 = vadd.f32 %v1367, %v1407
  %v1455 = vadd.f32 %v1368, %v1409
  %v1456 = vadd.f32 %v1369, %v1448
  %v1457 = vadd.f32 %v1370, %v1450
  %v1458 = vxor.u32 %v1454, 2147483648
  %v1459 = vxor.u32 %v1455, 2147483648
  %v1460 = vxor.u32 %v1456, 2147483648
  %v1461 = vmul.f32 %v1458, 1.442695
  %v1462 = vpow.pop %v1461
  %v1463 = vmul.f32 %v1459, 1.442695
  %v1464 = vpow.pop %v1463
  %v1465 = vmul.f32 %v1460, 1.442695
  %v1466 = vpow.pop %v1465
  %v1467 = vadd.f32 %v1462, 1.0
  %v1468 = vadd.f32 %v1464, 1.0
  %v1469 = vadd.f32 %v1466, 1.0
  %v1470 = vrcp.pop %v1467
  %v1471 = vmul.f32 1.0, %v1470
  %v1472 = vrcp.pop %v1468
  %v1473 = vmul.f32 1.0, %v1472
  %v1474 = vrcp.pop %v1469
  %v1475 = vmul.f32 1.0, %v1474
  %v1476 = vtanh.pop %v1457
  %v1477 = vmul.f32 %v1473, %v1363
  %v1478 = vmul.f32 %v1471, %v1476
  %v1479 = vadd.f32 %v1477, %v1478
  %v1480 = vtanh.pop %v1479
  %v1481 = vmul.f32 %v1475, %v1480
  %1482 = vst [vmem:[#allocation4 + $0x18] sm:$0xff] %v1481
  %v1483 = vld [vmem:[#allocation3 + $0x80] sm:$0xff]
  %v1484 = vld [vmem:[#allocation3 + $0x88] sm:$0xff]
  %v1485 = vld [vmem:[#allocation3 + $0x90] sm:$0xff]
  %v1486 = vld [vmem:[#allocation3 + $0x98] sm:$0xff]
  %v1487 = vpack.c.bf16 %v1481, %v1481
  %1488 = vmatprep.subr.bf16.mxu0 %v989
  %1489 = vmatpush1.bf16.msra.mxu0 %v988
  %1490 = vmatprep.subr.bf16.mxu0 %v985
  %1491 = vmatpush1.bf16.msra.mxu0 %v984
  %1492 = vmatprep.subr.bf16.mxu0 %v981
  %1493 = vmatpush1.bf16.msra.mxu0 %v980
  %1494 = vmatprep.subr.bf16.mxu0 %v977
  %1495 = vmatpush1.bf16.msra.mxu0 %v976
  %1496 = vmatprep.subr.bf16.mxu0 %v973
  %1497 = vmatpush1.bf16.msra.mxu0 %v972
  %1498 = vmatprep.subr.bf16.mxu0 %v969
  %1499 = vmatpush1.bf16.msra.mxu0 %v968
  %1500 = vmatprep.subr.bf16.mxu0 %v965
  %1501 = vmatpush1.bf16.msra.mxu0 %v964
  %1502 = vmatprep.subr.bf16.mxu0 %v961
  %1503 = vmatpush1.bf16.msra.mxu0 %v960
  %1504 = vmatprep.subr.bf16.mxu0 0
  %1505 = vmatpush2.bf16.msra.mxu0 0
  %1506 = vmatprep.subr.bf16.mxu0 0
  %1507 = vmatpush2.bf16.msra.mxu0 0
  %1508 = vmatprep.subr.bf16.mxu0 0
  %1509 = vmatpush2.bf16.msra.mxu0 0
  %1510 = vmatprep.subr.bf16.mxu0 0
  %1511 = vmatpush2.bf16.msra.mxu0 0
  %1512 = vmatprep.subr.bf16.mxu0 0
  %1513 = vmatpush2.bf16.msra.mxu0 0
  %1514 = vmatprep.subr.bf16.mxu0 0
  %1515 = vmatpush2.bf16.msra.mxu0 0
  %1516 = vmatprep.subr.bf16.mxu0 0
  %1517 = vmatpush2.bf16.msra.mxu0 0
  %1518 = vmatprep.subr.bf16.mxu0 0
  %1519 = vmatpush2.bf16.msra.mxu0 0
  %1520 = vmatprep.mubr.bf16.mxu0 0
  %1521 = vmatmul.mubr.bf16.gmra.mxu0 %v1487
  %v1522 = vpop.f32.mrf.mxu0
  %v1523 = vadd.f32 0.0, %v1522
  %v1524 = vpop.f32.mrf.mxu0
  %v1525 = vadd.f32 0.0, %v1524
  %v1526 = vpop.f32.mrf.mxu0
  %v1527 = vpop.f32.mrf.mxu0
  %1528 = vdwg.mxu0
  %1529 = vmatprep.subr.bf16.mxu0 %v991
  %1530 = vmatpush1.bf16.msra.mxu0 %v990
  %1531 = vmatprep.subr.bf16.mxu0 %v987
  %1532 = vmatpush1.bf16.msra.mxu0 %v986
  %1533 = vmatprep.subr.bf16.mxu0 %v983
  %1534 = vmatpush1.bf16.msra.mxu0 %v982
  %1535 = vmatprep.subr.bf16.mxu0 %v979
  %1536 = vmatpush1.bf16.msra.mxu0 %v978
  %1537 = vmatprep.subr.bf16.mxu0 %v975
  %1538 = vmatpush1.bf16.msra.mxu0 %v974
  %1539 = vmatprep.subr.bf16.mxu0 %v971
  %1540 = vmatpush1.bf16.msra.mxu0 %v970
  %1541 = vmatprep.subr.bf16.mxu0 %v967
  %1542 = vmatpush1.bf16.msra.mxu0 %v966
  %1543 = vmatprep.subr.bf16.mxu0 %v963
  %1544 = vmatpush1.bf16.msra.mxu0 %v962
  %1545 = vmatprep.subr.bf16.mxu0 0
  %1546 = vmatpush2.bf16.msra.mxu0 0
  %1547 = vmatprep.subr.bf16.mxu0 0
  %1548 = vmatpush2.bf16.msra.mxu0 0
  %1549 = vmatprep.subr.bf16.mxu0 0
  %1550 = vmatpush2.bf16.msra.mxu0 0
  %1551 = vmatprep.subr.bf16.mxu0 0
  %1552 = vmatpush2.bf16.msra.mxu0 0
  %1553 = vmatprep.subr.bf16.mxu0 0
  %1554 = vmatpush2.bf16.msra.mxu0 0
  %1555 = vmatprep.subr.bf16.mxu0 0
  %1556 = vmatpush2.bf16.msra.mxu0 0
  %1557 = vmatprep.subr.bf16.mxu0 0
  %1558 = vmatpush2.bf16.msra.mxu0 0
  %1559 = vmatprep.subr.bf16.mxu0 0
  %1560 = vmatpush2.bf16.msra.mxu0 0
  %1561 = vmatprep.mubr.bf16.mxu0 0
  %1562 = vmatmul.mubr.bf16.gmra.mxu0 %v1487
  %v1563 = vpop.f32.mrf.mxu0
  %v1564 = vadd.f32 0.0, %v1563
  %v1565 = vpop.f32.mrf.mxu0
  %v1566 = vadd.f32 0.0, %v1565
  %v1567 = vpop.f32.mrf.mxu0
  %v1568 = vpop.f32.mrf.mxu0
  %1569 = vdwg.mxu0
  %v1570 = vadd.f32 %v1483, %v1523
  %v1571 = vadd.f32 %v1484, %v1525
  %v1572 = vadd.f32 %v1485, %v1564
  %v1573 = vadd.f32 %v1486, %v1566
  %v1574 = vxor.u32 %v1570, 2147483648
  %v1575 = vxor.u32 %v1571, 2147483648
  %v1576 = vxor.u32 %v1572, 2147483648
  %v1577 = vmul.f32 %v1574, 1.442695
  %v1578 = vpow.pop %v1577
  %v1579 = vmul.f32 %v1575, 1.442695
  %v1580 = vpow.pop %v1579
  %v1581 = vmul.f32 %v1576, 1.442695
  %v1582 = vpow.pop %v1581
  %v1583 = vadd.f32 %v1578, 1.0
  %v1584 = vadd.f32 %v1580, 1.0
  %v1585 = vadd.f32 %v1582, 1.0
  %v1586 = vrcp.pop %v1583
  %v1587 = vmul.f32 1.0, %v1586
  %v1588 = vrcp.pop %v1584
  %v1589 = vmul.f32 1.0, %v1588
  %v1590 = vrcp.pop %v1585
  %v1591 = vmul.f32 1.0, %v1590
  %v1592 = vtanh.pop %v1573
  %v1593 = vmul.f32 %v1589, %v1479
  %v1594 = vmul.f32 %v1587, %v1592
  %v1595 = vadd.f32 %v1593, %v1594
  %v1596 = vtanh.pop %v1595
  %v1597 = vmul.f32 %v1591, %v1596
  %1598 = vst [vmem:[#allocation4 + $0x20] sm:$0xff] %v1597
  %v1599 = vld [vmem:[#allocation3 + $0xa0] sm:$0xff]
  %v1600 = vld [vmem:[#allocation3 + $0xa8] sm:$0xff]
  %v1601 = vld [vmem:[#allocation3 + $0xb0] sm:$0xff]
  %v1602 = vld [vmem:[#allocation3 + $0xb8] sm:$0xff]
  %v1603 = vpack.c.bf16 %v1597, %v1597
  %1604 = vmatprep.subr.bf16.mxu0 %v989
  %1605 = vmatpush1.bf16.msra.mxu0 %v988
  %1606 = vmatprep.subr.bf16.mxu0 %v985
  %1607 = vmatpush1.bf16.msra.mxu0 %v984
  %1608 = vmatprep.subr.bf16.mxu0 %v981
  %1609 = vmatpush1.bf16.msra.mxu0 %v980
  %1610 = vmatprep.subr.bf16.mxu0 %v977
  %1611 = vmatpush1.bf16.msra.mxu0 %v976
  %1612 = vmatprep.subr.bf16.mxu0 %v973
  %1613 = vmatpush1.bf16.msra.mxu0 %v972
  %1614 = vmatprep.subr.bf16.mxu0 %v969
  %1615 = vmatpush1.bf16.msra.mxu0 %v968
  %1616 = vmatprep.subr.bf16.mxu0 %v965
  %1617 = vmatpush1.bf16.msra.mxu0 %v964
  %1618 = vmatprep.subr.bf16.mxu0 %v961
  %1619 = vmatpush1.bf16.msra.mxu0 %v960
  %1620 = vmatprep.subr.bf16.mxu0 0
  %1621 = vmatpush2.bf16.msra.mxu0 0
  %1622 = vmatprep.subr.bf16.mxu0 0
  %1623 = vmatpush2.bf16.msra.mxu0 0
  %1624 = vmatprep.subr.bf16.mxu0 0
  %1625 = vmatpush2.bf16.msra.mxu0 0
  %1626 = vmatprep.subr.bf16.mxu0 0
  %1627 = vmatpush2.bf16.msra.mxu0 0
  %1628 = vmatprep.subr.bf16.mxu0 0
  %1629 = vmatpush2.bf16.msra.mxu0 0
  %1630 = vmatprep.subr.bf16.mxu0 0
  %1631 = vmatpush2.bf16.msra.mxu0 0
  %1632 = vmatprep.subr.bf16.mxu0 0
  %1633 = vmatpush2.bf16.msra.mxu0 0
  %1634 = vmatprep.subr.bf16.mxu0 0
  %1635 = vmatpush2.bf16.msra.mxu0 0
  %1636 = vmatprep.mubr.bf16.mxu0 0
  %1637 = vmatmul.mubr.bf16.gmra.mxu0 %v1603
  %v1638 = vpop.f32.mrf.mxu0
  %v1639 = vadd.f32 0.0, %v1638
  %v1640 = vpop.f32.mrf.mxu0
  %v1641 = vadd.f32 0.0, %v1640
  %v1642 = vpop.f32.mrf.mxu0
  %v1643 = vpop.f32.mrf.mxu0
  %1644 = vdwg.mxu0
  %1645 = vmatprep.subr.bf16.mxu0 %v991
  %1646 = vmatpush1.bf16.msra.mxu0 %v990
  %1647 = vmatprep.subr.bf16.mxu0 %v987
  %1648 = vmatpush1.bf16.msra.mxu0 %v986
  %1649 = vmatprep.subr.bf16.mxu0 %v983
  %1650 = vmatpush1.bf16.msra.mxu0 %v982
  %1651 = vmatprep.subr.bf16.mxu0 %v979
  %1652 = vmatpush1.bf16.msra.mxu0 %v978
  %1653 = vmatprep.subr.bf16.mxu0 %v975
  %1654 = vmatpush1.bf16.msra.mxu0 %v974
  %1655 = vmatprep.subr.bf16.mxu0 %v971
  %1656 = vmatpush1.bf16.msra.mxu0 %v970
  %1657 = vmatprep.subr.bf16.mxu0 %v967
  %1658 = vmatpush1.bf16.msra.mxu0 %v966
  %1659 = vmatprep.subr.bf16.mxu0 %v963
  %1660 = vmatpush1.bf16.msra.mxu0 %v962
  %1661 = vmatprep.subr.bf16.mxu0 0
  %1662 = vmatpush2.bf16.msra.mxu0 0
  %1663 = vmatprep.subr.bf16.mxu0 0
  %1664 = vmatpush2.bf16.msra.mxu0 0
  %1665 = vmatprep.subr.bf16.mxu0 0
  %1666 = vmatpush2.bf16.msra.mxu0 0
  %1667 = vmatprep.subr.bf16.mxu0 0
  %1668 = vmatpush2.bf16.msra.mxu0 0
  %1669 = vmatprep.subr.bf16.mxu0 0
  %1670 = vmatpush2.bf16.msra.mxu0 0
  %1671 = vmatprep.subr.bf16.mxu0 0
  %1672 = vmatpush2.bf16.msra.mxu0 0
  %1673 = vmatprep.subr.bf16.mxu0 0
  %1674 = vmatpush2.bf16.msra.mxu0 0
  %1675 = vmatprep.subr.bf16.mxu0 0
  %1676 = vmatpush2.bf16.msra.mxu0 0
  %1677 = vmatprep.mubr.bf16.mxu0 0
  %1678 = vmatmul.mubr.bf16.gmra.mxu0 %v1603
  %v1679 = vpop.f32.mrf.mxu0
  %v1680 = vadd.f32 0.0, %v1679
  %v1681 = vpop.f32.mrf.mxu0
  %v1682 = vadd.f32 0.0, %v1681
  %v1683 = vpop.f32.mrf.mxu0
  %v1684 = vpop.f32.mrf.mxu0
  %1685 = vdwg.mxu0
  %v1686 = vadd.f32 %v1599, %v1639
  %v1687 = vadd.f32 %v1600, %v1641
  %v1688 = vadd.f32 %v1601, %v1680
  %v1689 = vadd.f32 %v1602, %v1682
  %v1690 = vxor.u32 %v1686, 2147483648
  %v1691 = vxor.u32 %v1687, 2147483648
  %v1692 = vxor.u32 %v1688, 2147483648
  %v1693 = vmul.f32 %v1690, 1.442695
  %v1694 = vpow.pop %v1693
  %v1695 = vmul.f32 %v1691, 1.442695
  %v1696 = vpow.pop %v1695
  %v1697 = vmul.f32 %v1692, 1.442695
  %v1698 = vpow.pop %v1697
  %v1699 = vadd.f32 %v1694, 1.0
  %v1700 = vadd.f32 %v1696, 1.0
  %v1701 = vadd.f32 %v1698, 1.0
  %v1702 = vrcp.pop %v1699
  %v1703 = vmul.f32 1.0, %v1702
  %v1704 = vrcp.pop %v1700
  %v1705 = vmul.f32 1.0, %v1704
  %v1706 = vrcp.pop %v1701
  %v1707 = vmul.f32 1.0, %v1706
  %v1708 = vtanh.pop %v1689
  %v1709 = vmul.f32 %v1705, %v1595
  %v1710 = vmul.f32 %v1703, %v1708
  %v1711 = vadd.f32 %v1709, %v1710
  %v1712 = vtanh.pop %v1711
  %v1713 = vmul.f32 %v1707, %v1712
  %1714 = vst [vmem:[#allocation4 + $0x28] sm:$0xff] %v1713
  %v1715 = vld [vmem:[#allocation3 + $0xc0] sm:$0xff]
  %v1716 = vld [vmem:[#allocation3 + $0xc8] sm:$0xff]
  %v1717 = vld [vmem:[#allocation3 + $0xd0] sm:$0xff]
  %v1718 = vld [vmem:[#allocation3 + $0xd8] sm:$0xff]
  %v1719 = vpack.c.bf16 %v1713, %v1713
  %1720 = vmatprep.subr.bf16.mxu0 %v989
  %1721 = vmatpush1.bf16.msra.mxu0 %v988
  %1722 = vmatprep.subr.bf16.mxu0 %v985
  %1723 = vmatpush1.bf16.msra.mxu0 %v984
  %1724 = vmatprep.subr.bf16.mxu0 %v981
  %1725 = vmatpush1.bf16.msra.mxu0 %v980
  %1726 = vmatprep.subr.bf16.mxu0 %v977
  %1727 = vmatpush1.bf16.msra.mxu0 %v976
  %1728 = vmatprep.subr.bf16.mxu0 %v973
  %1729 = vmatpush1.bf16.msra.mxu0 %v972
  %1730 = vmatprep.subr.bf16.mxu0 %v969
  %1731 = vmatpush1.bf16.msra.mxu0 %v968
  %1732 = vmatprep.subr.bf16.mxu0 %v965
  %1733 = vmatpush1.bf16.msra.mxu0 %v964
  %1734 = vmatprep.subr.bf16.mxu0 %v961
  %1735 = vmatpush1.bf16.msra.mxu0 %v960
  %1736 = vmatprep.subr.bf16.mxu0 0
  %1737 = vmatpush2.bf16.msra.mxu0 0
  %1738 = vmatprep.subr.bf16.mxu0 0
  %1739 = vmatpush2.bf16.msra.mxu0 0
  %1740 = vmatprep.subr.bf16.mxu0 0
  %1741 = vmatpush2.bf16.msra.mxu0 0
  %1742 = vmatprep.subr.bf16.mxu0 0
  %1743 = vmatpush2.bf16.msra.mxu0 0
  %1744 = vmatprep.subr.bf16.mxu0 0
  %1745 = vmatpush2.bf16.msra.mxu0 0
  %1746 = vmatprep.subr.bf16.mxu0 0
  %1747 = vmatpush2.bf16.msra.mxu0 0
  %1748 = vmatprep.subr.bf16.mxu0 0
  %1749 = vmatpush2.bf16.msra.mxu0 0
  %1750 = vmatprep.subr.bf16.mxu0 0
  %1751 = vmatpush2.bf16.msra.mxu0 0
  %1752 = vmatprep.mubr.bf16.mxu0 0
  %1753 = vmatmul.mubr.bf16.gmra.mxu0 %v1719
  %v1754 = vpop.f32.mrf.mxu0
  %v1755 = vadd.f32 0.0, %v1754
  %v1756 = vpop.f32.mrf.mxu0
  %v1757 = vadd.f32 0.0, %v1756
  %v1758 = vpop.f32.mrf.mxu0
  %v1759 = vpop.f32.mrf.mxu0
  %1760 = vdwg.mxu0
  %1761 = vmatprep.subr.bf16.mxu0 %v991
  %1762 = vmatpush1.bf16.msra.mxu0 %v990
  %1763 = vmatprep.subr.bf16.mxu0 %v987
  %1764 = vmatpush1.bf16.msra.mxu0 %v986
  %1765 = vmatprep.subr.bf16.mxu0 %v983
  %1766 = vmatpush1.bf16.msra.mxu0 %v982
  %1767 = vmatprep.subr.bf16.mxu0 %v979
  %1768 = vmatpush1.bf16.msra.mxu0 %v978
  %1769 = vmatprep.subr.bf16.mxu0 %v975
  %1770 = vmatpush1.bf16.msra.mxu0 %v974
  %1771 = vmatprep.subr.bf16.mxu0 %v971
  %1772 = vmatpush1.bf16.msra.mxu0 %v970
  %1773 = vmatprep.subr.bf16.mxu0 %v967
  %1774 = vmatpush1.bf16.msra.mxu0 %v966
  %1775 = vmatprep.subr.bf16.mxu0 %v963
  %1776 = vmatpush1.bf16.msra.mxu0 %v962
  %1777 = vmatprep.subr.bf16.mxu0 0
  %1778 = vmatpush2.bf16.msra.mxu0 0
  %1779 = vmatprep.subr.bf16.mxu0 0
  %1780 = vmatpush2.bf16.msra.mxu0 0
  %1781 = vmatprep.subr.bf16.mxu0 0
  %1782 = vmatpush2.bf16.msra.mxu0 0
  %1783 = vmatprep.subr.bf16.mxu0 0
  %1784 = vmatpush2.bf16.msra.mxu0 0
  %1785 = vmatprep.subr.bf16.mxu0 0
  %1786 = vmatpush2.bf16.msra.mxu0 0
  %1787 = vmatprep.subr.bf16.mxu0 0
  %1788 = vmatpush2.bf16.msra.mxu0 0
  %1789 = vmatprep.subr.bf16.mxu0 0
  %1790 = vmatpush2.bf16.msra.mxu0 0
  %1791 = vmatprep.subr.bf16.mxu0 0
  %1792 = vmatpush2.bf16.msra.mxu0 0
  %1793 = vmatprep.mubr.bf16.mxu0 0
  %1794 = vmatmul.mubr.bf16.gmra.mxu0 %v1719
  %v1795 = vpop.f32.mrf.mxu0
  %v1796 = vadd.f32 0.0, %v1795
  %v1797 = vpop.f32.mrf.mxu0
  %v1798 = vadd.f32 0.0, %v1797
  %v1799 = vpop.f32.mrf.mxu0
  %v1800 = vpop.f32.mrf.mxu0
  %1801 = vdwg.mxu0
  %v1802 = vadd.f32 %v1715, %v1755
  %v1803 = vadd.f32 %v1716, %v1757
  %v1804 = vadd.f32 %v1717, %v1796
  %v1805 = vadd.f32 %v1718, %v1798
  %v1806 = vxor.u32 %v1802, 2147483648
  %v1807 = vxor.u32 %v1803, 2147483648
  %v1808 = vxor.u32 %v1804, 2147483648
  %v1809 = vmul.f32 %v1806, 1.442695
  %v1810 = vpow.pop %v1809
  %v1811 = vmul.f32 %v1807, 1.442695
  %v1812 = vpow.pop %v1811
  %v1813 = vmul.f32 %v1808, 1.442695
  %v1814 = vpow.pop %v1813
  %v1815 = vadd.f32 %v1810, 1.0
  %v1816 = vadd.f32 %v1812, 1.0
  %v1817 = vadd.f32 %v1814, 1.0
  %v1818 = vrcp.pop %v1815
  %v1819 = vmul.f32 1.0, %v1818
  %v1820 = vrcp.pop %v1816
  %v1821 = vmul.f32 1.0, %v1820
  %v1822 = vrcp.pop %v1817
  %v1823 = vmul.f32 1.0, %v1822
  %v1824 = vtanh.pop %v1805
  %v1825 = vmul.f32 %v1821, %v1711
  %v1826 = vmul.f32 %v1819, %v1824
  %v1827 = vadd.f32 %v1825, %v1826
  %v1828 = vtanh.pop %v1827
  %v1829 = vmul.f32 %v1823, %v1828
  %1830 = vst [vmem:[#allocation4 + $0x30] sm:$0xff] %v1829
  %v1831 = vld [vmem:[#allocation3 + $0xe0] sm:$0xff]
  %v1832 = vld [vmem:[#allocation3 + $0xe8] sm:$0xff]
  %v1833 = vld [vmem:[#allocation3 + $0xf0] sm:$0xff]
  %v1834 = vld [vmem:[#allocation3 + $0xf8] sm:$0xff]
  %v1835 = vpack.c.bf16 %v1829, %v1829
  %1836 = vmatprep.subr.bf16.mxu0 %v989
  %1837 = vmatpush1.bf16.msra.mxu0 %v988
  %1838 = vmatprep.subr.bf16.mxu0 %v985
  %1839 = vmatpush1.bf16.msra.mxu0 %v984
  %1840 = vmatprep.subr.bf16.mxu0 %v981
  %1841 = vmatpush1.bf16.msra.mxu0 %v980
  %1842 = vmatprep.subr.bf16.mxu0 %v977
  %1843 = vmatpush1.bf16.msra.mxu0 %v976
  %1844 = vmatprep.subr.bf16.mxu0 %v973
  %1845 = vmatpush1.bf16.msra.mxu0 %v972
  %1846 = vmatprep.subr.bf16.mxu0 %v969
  %1847 = vmatpush1.bf16.msra.mxu0 %v968
  %1848 = vmatprep.subr.bf16.mxu0 %v965
  %1849 = vmatpush1.bf16.msra.mxu0 %v964
  %1850 = vmatprep.subr.bf16.mxu0 %v961
  %1851 = vmatpush1.bf16.msra.mxu0 %v960
  %1852 = vmatprep.subr.bf16.mxu0 0
  %1853 = vmatpush2.bf16.msra.mxu0 0
  %1854 = vmatprep.subr.bf16.mxu0 0
  %1855 = vmatpush2.bf16.msra.mxu0 0
  %1856 = vmatprep.subr.bf16.mxu0 0
  %1857 = vmatpush2.bf16.msra.mxu0 0
  %1858 = vmatprep.subr.bf16.mxu0 0
  %1859 = vmatpush2.bf16.msra.mxu0 0
  %1860 = vmatprep.subr.bf16.mxu0 0
  %1861 = vmatpush2.bf16.msra.mxu0 0
  %1862 = vmatprep.subr.bf16.mxu0 0
  %1863 = vmatpush2.bf16.msra.mxu0 0
  %1864 = vmatprep.subr.bf16.mxu0 0
  %1865 = vmatpush2.bf16.msra.mxu0 0
  %1866 = vmatprep.subr.bf16.mxu0 0
  %1867 = vmatpush2.bf16.msra.mxu0 0
  %1868 = vmatprep.mubr.bf16.mxu0 0
  %1869 = vmatmul.mubr.bf16.gmra.mxu0 %v1835
  %v1870 = vpop.f32.mrf.mxu0
  %v1871 = vadd.f32 0.0, %v1870
  %v1872 = vpop.f32.mrf.mxu0
  %v1873 = vadd.f32 0.0, %v1872
  %v1874 = vpop.f32.mrf.mxu0
  %v1875 = vpop.f32.mrf.mxu0
  %1876 = vdwg.mxu0
  %1877 = vmatprep.subr.bf16.mxu0 %v991
  %1878 = vmatpush1.bf16.msra.mxu0 %v990
  %1879 = vmatprep.subr.bf16.mxu0 %v987
  %1880 = vmatpush1.bf16.msra.mxu0 %v986
  %1881 = vmatprep.subr.bf16.mxu0 %v983
  %1882 = vmatpush1.bf16.msra.mxu0 %v982
  %1883 = vmatprep.subr.bf16.mxu0 %v979
  %1884 = vmatpush1.bf16.msra.mxu0 %v978
  %1885 = vmatprep.subr.bf16.mxu0 %v975
  %1886 = vmatpush1.bf16.msra.mxu0 %v974
  %1887 = vmatprep.subr.bf16.mxu0 %v971
  %1888 = vmatpush1.bf16.msra.mxu0 %v970
  %1889 = vmatprep.subr.bf16.mxu0 %v967
  %1890 = vmatpush1.bf16.msra.mxu0 %v966
  %1891 = vmatprep.subr.bf16.mxu0 %v963
  %1892 = vmatpush1.bf16.msra.mxu0 %v962
  %1893 = vmatprep.subr.bf16.mxu0 0
  %1894 = vmatpush2.bf16.msra.mxu0 0
  %1895 = vmatprep.subr.bf16.mxu0 0
  %1896 = vmatpush2.bf16.msra.mxu0 0
  %1897 = vmatprep.subr.bf16.mxu0 0
  %1898 = vmatpush2.bf16.msra.mxu0 0
  %1899 = vmatprep.subr.bf16.mxu0 0
  %1900 = vmatpush2.bf16.msra.mxu0 0
  %1901 = vmatprep.subr.bf16.mxu0 0
  %1902 = vmatpush2.bf16.msra.mxu0 0
  %1903 = vmatprep.subr.bf16.mxu0 0
  %1904 = vmatpush2.bf16.msra.mxu0 0
  %1905 = vmatprep.subr.bf16.mxu0 0
  %1906 = vmatpush2.bf16.msra.mxu0 0
  %1907 = vmatprep.subr.bf16.mxu0 0
  %1908 = vmatpush2.bf16.msra.mxu0 0
  %1909 = vmatprep.mubr.bf16.mxu0 0
  %1910 = vmatmul.mubr.bf16.gmra.mxu0 %v1835
  %v1911 = vpop.f32.mrf.mxu0
  %v1912 = vadd.f32 0.0, %v1911
  %v1913 = vpop.f32.mrf.mxu0
  %v1914 = vadd.f32 0.0, %v1913
  %v1915 = vpop.f32.mrf.mxu0
  %v1916 = vpop.f32.mrf.mxu0
  %1917 = vdwg.mxu0
  %v1918 = vadd.f32 %v1831, %v1871
  %v1919 = vadd.f32 %v1832, %v1873
  %v1920 = vadd.f32 %v1833, %v1912
  %v1921 = vadd.f32 %v1834, %v1914
  %v1922 = vxor.u32 %v1918, 2147483648
  %v1923 = vxor.u32 %v1919, 2147483648
  %v1924 = vxor.u32 %v1920, 2147483648
  %v1925 = vmul.f32 %v1922, 1.442695
  %v1926 = vpow.pop %v1925
  %v1927 = vmul.f32 %v1923, 1.442695
  %v1928 = vpow.pop %v1927
  %v1929 = vmul.f32 %v1924, 1.442695
  %v1930 = vpow.pop %v1929
  %v1931 = vadd.f32 %v1926, 1.0
  %v1932 = vadd.f32 %v1928, 1.0
  %v1933 = vadd.f32 %v1930, 1.0
  %v1934 = vrcp.pop %v1931
  %v1935 = vmul.f32 1.0, %v1934
  %v1936 = vrcp.pop %v1932
  %v1937 = vmul.f32 1.0, %v1936
  %v1938 = vrcp.pop %v1933
  %v1939 = vmul.f32 1.0, %v1938
  %v1940 = vtanh.pop %v1921
  %v1941 = vmul.f32 %v1937, %v1827
  %v1942 = vmul.f32 %v1935, %v1940
  %v1943 = vadd.f32 %v1941, %v1942
  %v1944 = vtanh.pop %v1943
  %v1945 = vmul.f32 %v1939, %v1944
  %1946 = vst [vmem:[#allocation4 + $0x38] sm:$0xff] %v1945
  %1947 = vst [vmem:[%s10] sm:$0xff] %v1945
  %1948 = vst [vmem:[%s11] sm:$0xff] %v1943
  %v1949 = vld [vmem:[#allocation4] sm:$0xff]
  %v1950 = vld [vmem:[#allocation4 + $0x8] sm:$0xff]
  %v1951 = vld [vmem:[#allocation4 + $0x10] sm:$0xff]
  %v1952 = vld [vmem:[#allocation4 + $0x18] sm:$0xff]
  %v1953 = vld [vmem:[#allocation4 + $0x20] sm:$0xff]
  %v1954 = vld [vmem:[#allocation4 + $0x28] sm:$0xff]
  %v1955 = vld [vmem:[#allocation4 + $0x30] sm:$0xff]
  %v1956 = vld [vmem:[#allocation4 + $0x38] sm:$0xff]
  %v1957 = vpack.c.bf16 %v1950, %v1949
  %v1958 = vpack.c.bf16 %v1952, %v1951
  %v1959 = vpack.c.bf16 %v1954, %v1953
  %v1960 = vpack.c.bf16 %v1956, %v1955
  %v1961 = vld [vmem:[%s7] sm:$0xf]
  %v1962 = vld [vmem:[%s7 + $0x4] sm:$0xf]
  %v1963 = vld [vmem:[%s7 + $0x8] sm:$0xf]
  %v1964 = vld [vmem:[%s7 + $0xc] sm:$0xf]
  %v1965 = vld [vmem:[%s7 + $0x10] sm:$0xf]
  %v1966 = vld [vmem:[%s7 + $0x14] sm:$0xf]
  %v1967 = vld [vmem:[%s7 + $0x18] sm:$0xf]
  %v1968 = vld [vmem:[%s7 + $0x1c] sm:$0xf]
  %v1969 = vld [vmem:[%s7 + $0x20] sm:$0xf]
  %v1970 = vld [vmem:[%s7 + $0x24] sm:$0xf]
  %v1971 = vld [vmem:[%s7 + $0x28] sm:$0xf]
  %v1972 = vld [vmem:[%s7 + $0x2c] sm:$0xf]
  %v1973 = vld [vmem:[%s7 + $0x30] sm:$0xf]
  %v1974 = vld [vmem:[%s7 + $0x34] sm:$0xf]
  %v1975 = vld [vmem:[%s7 + $0x38] sm:$0xf]
  %v1976 = vld [vmem:[%s7 + $0x3c] sm:$0xf]
  %v1977 = vld [vmem:[%s8] sm:$0x1]
  %v1979 = vlaneseq
  %v1980 = vshrl.u32 %v1979, 7
  %v1981 = vsub.s32 0, %v1980
  %v1982 = vrot.slane %v1977, %v1981
  %v2000 = vunpack.c.l.b16 %v1961
  %v2001 = vunpack.c.l.b16 %v1962
  %v2002 = vunpack.c.l.b16 %v1963
  %v2003 = vunpack.c.l.b16 %v1964
  %v2004 = vunpack.c.l.b16 %v1965
  %v2005 = vunpack.c.l.b16 %v1966
  %v2006 = vunpack.c.l.b16 %v1967
  %v2007 = vunpack.c.l.b16 %v1968
  %v2008 = vunpack.c.l.b16 %v1969
  %v2009 = vunpack.c.l.b16 %v1970
  %v2010 = vunpack.c.l.b16 %v1971
  %v2011 = vunpack.c.l.b16 %v1972
  %v2012 = vunpack.c.l.b16 %v1973
  %v2013 = vunpack.c.l.b16 %v1974
  %v2014 = vunpack.c.l.b16 %v1975
  %v2015 = vunpack.c.l.b16 %v1976
  %v2016 = vpack.c.b16 %v2001, %v2000
  %v2017 = vpack.c.b16 %v2003, %v2002
  %v2018 = vpack.c.b16 %v2005, %v2004
  %v2019 = vpack.c.b16 %v2007, %v2006
  %v2020 = vpack.c.b16 %v2009, %v2008
  %v2021 = vpack.c.b16 %v2011, %v2010
  %v2022 = vpack.c.b16 %v2013, %v2012
  %v2023 = vpack.c.b16 %v2015, %v2014
  %2032 = vmatprep.subr.bf16.mxu0 0
  %2033 = vmatpush1.bf16.msra.mxu0 %v2023
  %2034 = vmatprep.subr.bf16.mxu0 0
  %2035 = vmatpush1.bf16.msra.mxu0 %v2022
  %2036 = vmatprep.subr.bf16.mxu0 0
  %2037 = vmatpush1.bf16.msra.mxu0 %v2021
  %2038 = vmatprep.subr.bf16.mxu0 0
  %2039 = vmatpush1.bf16.msra.mxu0 %v2020
  %2040 = vmatprep.subr.bf16.mxu0 0
  %2041 = vmatpush1.bf16.msra.mxu0 %v2019
  %2042 = vmatprep.subr.bf16.mxu0 0
  %2043 = vmatpush1.bf16.msra.mxu0 %v2018
  %2044 = vmatprep.subr.bf16.mxu0 0
  %2045 = vmatpush1.bf16.msra.mxu0 %v2017
  %2046 = vmatprep.subr.bf16.mxu0 0
  %2047 = vmatpush1.bf16.msra.mxu0 %v2016
  %2048 = vmatprep.subr.bf16.mxu0 0
  %2049 = vmatpush2.bf16.msra.mxu0 0
  %2050 = vmatprep.subr.bf16.mxu0 0
  %2051 = vmatpush2.bf16.msra.mxu0 0
  %2052 = vmatprep.subr.bf16.mxu0 0
  %2053 = vmatpush2.bf16.msra.mxu0 0
  %2054 = vmatprep.subr.bf16.mxu0 0
  %2055 = vmatpush2.bf16.msra.mxu0 0
  %2056 = vmatprep.subr.bf16.mxu0 0
  %2057 = vmatpush2.bf16.msra.mxu0 0
  %2058 = vmatprep.subr.bf16.mxu0 0
  %2059 = vmatpush2.bf16.msra.mxu0 0
  %2060 = vmatprep.subr.bf16.mxu0 0
  %2061 = vmatpush2.bf16.msra.mxu0 0
  %2062 = vmatprep.subr.bf16.mxu0 0
  %2063 = vmatpush2.bf16.msra.mxu0 0
  %2064 = vmatprep.mubr.bf16.mxu0 0
  %2065 = vmatmul.mubr.bf16.gmra.mxu0 %v1957
  %v2066 = vpop.f32.mrf.mxu0
  %v2067 = vadd.f32 %v1982, %v2066
  %v2068 = vpop.f32.mrf.mxu0
  %v2069 = vpop.f32.mrf.mxu0
  %v2070 = vadd.f32 %v1982, %v2069
  %v2071 = vpop.f32.mrf.mxu0
  %2072 = vmatprep.mubr.bf16.mxu0 0
  %2073 = vmatmul.mubr.bf16.gmra.mxu0 %v1958
  %v2074 = vpop.f32.mrf.mxu0
  %v2075 = vadd.f32 %v1982, %v2074
  %v2076 = vpop.f32.mrf.mxu0
  %v2077 = vpop.f32.mrf.mxu0
  %v2078 = vadd.f32 %v1982, %v2077
  %v2079 = vpop.f32.mrf.mxu0
  %2080 = vmatprep.mubr.bf16.mxu0 0
  %2081 = vmatmul.mubr.bf16.gmra.mxu0 %v1959
  %v2082 = vpop.f32.mrf.mxu0
  %v2083 = vadd.f32 %v1982, %v2082
  %v2084 = vpop.f32.mrf.mxu0
  %v2085 = vpop.f32.mrf.mxu0
  %v2086 = vadd.f32 %v1982, %v2085
  %v2087 = vpop.f32.mrf.mxu0
  %2088 = vmatprep.mubr.bf16.mxu0 0
  %2089 = vmatmul.mubr.bf16.gmra.mxu0 %v1960
  %v2090 = vpop.f32.mrf.mxu0
  %v2091 = vadd.f32 %v1982, %v2090
  %v2092 = vpop.f32.mrf.mxu0
  %v2093 = vpop.f32.mrf.mxu0
  %v2094 = vadd.f32 %v1982, %v2093
  %v2095 = vpop.f32.mrf.mxu0
  %2096 = vdwg.mxu0
  %2097 = vmax.xlane.f32.xlu0 %v2067
  %v2098 = vpop.xlane.xlu0 %2097
  %2099 = vmax.xlane.f32.xlu0 %v2070
  %v2100 = vpop.xlane.xlu0 %2099
  %2101 = vmax.xlane.f32.xlu0 %v2075
  %v2102 = vpop.xlane.xlu0 %2101
  %2103 = vmax.xlane.f32.xlu0 %v2078
  %v2104 = vpop.xlane.xlu0 %2103
  %2105 = vmax.xlane.f32.xlu0 %v2083
  %v2106 = vpop.xlane.xlu0 %2105
  %2107 = vmax.xlane.f32.xlu0 %v2086
  %v2108 = vpop.xlane.xlu0 %2107
  %2109 = vmax.xlane.f32.xlu0 %v2091
  %v2110 = vpop.xlane.xlu0 %2109
  %2111 = vmax.xlane.f32.xlu0 %v2094
  %v2112 = vpop.xlane.xlu0 %2111
  %v2113 = vsub.f32 %v2067, %v2098
  %v2114 = vsub.f32 %v2070, %v2100
  %v2115 = vsub.f32 %v2075, %v2102
  %v2116 = vsub.f32 %v2078, %v2104
  %v2117 = vsub.f32 %v2083, %v2106
  %v2118 = vsub.f32 %v2086, %v2108
  %v2119 = vsub.f32 %v2091, %v2110
  %v2120 = vsub.f32 %v2094, %v2112
  %v2121 = vmul.f32 %v2113, 1.442695
  %v2122 = vpow.pop %v2121
  %v2123 = vmul.f32 %v2114, 1.442695
  %v2124 = vpow.pop %v2123
  %v2125 = vmul.f32 %v2115, 1.442695
  %v2126 = vpow.pop %v2125
  %v2127 = vmul.f32 %v2116, 1.442695
  %v2128 = vpow.pop %v2127
  %v2129 = vmul.f32 %v2117, 1.442695
  %v2130 = vpow.pop %v2129
  %v2131 = vmul.f32 %v2118, 1.442695
  %v2132 = vpow.pop %v2131
  %v2133 = vmul.f32 %v2119, 1.442695
  %v2134 = vpow.pop %v2133
  %v2135 = vmul.f32 %v2120, 1.442695
  %v2136 = vpow.pop %v2135
  %2137 = vadd.xlane.f32.xlu0 %v2122
  %v2138 = vpop.xlane.xlu0 %2137
  %2139 = vadd.xlane.f32.xlu0 %v2124
  %v2140 = vpop.xlane.xlu0 %2139
  %2141 = vadd.xlane.f32.xlu0 %v2126
  %v2142 = vpop.xlane.xlu0 %2141
  %2143 = vadd.xlane.f32.xlu0 %v2128
  %v2144 = vpop.xlane.xlu0 %2143
  %2145 = vadd.xlane.f32.xlu0 %v2130
  %v2146 = vpop.xlane.xlu0 %2145
  %2147 = vadd.xlane.f32.xlu0 %v2132
  %v2148 = vpop.xlane.xlu0 %2147
  %2149 = vadd.xlane.f32.xlu0 %v2134
  %v2150 = vpop.xlane.xlu0 %2149
  %2151 = vadd.xlane.f32.xlu0 %v2136
  %v2152 = vpop.xlane.xlu0 %2151
  %v2153 = vlog2.pop %v2138
  %v2154 = vmul.f32 %v2153, 0.6931472
  %v2155 = vlog2.pop %v2140
  %v2156 = vmul.f32 %v2155, 0.6931472
  %v2157 = vlog2.pop %v2142
  %v2158 = vmul.f32 %v2157, 0.6931472
  %v2159 = vlog2.pop %v2144
  %v2160 = vmul.f32 %v2159, 0.6931472
  %v2161 = vlog2.pop %v2146
  %v2162 = vmul.f32 %v2161, 0.6931472
  %v2163 = vlog2.pop %v2148
  %v2164 = vmul.f32 %v2163, 0.6931472
  %v2165 = vlog2.pop %v2150
  %v2166 = vmul.f32 %v2165, 0.6931472
  %v2167 = vlog2.pop %v2152
  %v2168 = vmul.f32 %v2167, 0.6931472
  %v2169 = vsub.f32 %v2113, %v2154
  %v2170 = vsub.f32 %v2114, %v2156
  %v2171 = vsub.f32 %v2115, %v2158
  %v2172 = vsub.f32 %v2116, %v2160
  %v2173 = vsub.f32 %v2117, %v2162
  %v2174 = vsub.f32 %v2118, %v2164
  %v2175 = vsub.f32 %v2119, %v2166
  %v2176 = vsub.f32 %v2120, %v2168
  %2177 = vst [vmem:[%s9] sm:$0xff] %v2169
  %2178 = vst [vmem:[%s9 + $0x8] sm:$0xff] %v2170
  %2179 = vst [vmem:[%s9 + $0x10] sm:$0xff] %v2171
  %2180 = vst [vmem:[%s9 + $0x18] sm:$0xff] %v2172
  %2181 = vst [vmem:[%s9 + $0x20] sm:$0xff] %v2173
  %2182 = vst [vmem:[%s9 + $0x28] sm:$0xff] %v2174
  %2183 = vst [vmem:[%s9 + $0x30] sm:$0xff] %v2175
  %2184 = vst [vmem:[%s9 + $0x38] sm:$0xff] %v2176
  // Predicated region
  $region38: #{name_generator_forward.1} parent=0 // pred_check
    _
  $region39: #{name_generator_forward.1} parent=0 // pred_check_branch
    %2186 = sbr.rel (0) target = $region41
  $region40: #{name_generator_forward.1} parent=0 // pred_region
    _
  $region41: #{name_generator_forward.1} parent=0 // pred_fallthru
    _
  // Predicated region
  $region42: #{name_generator_forward.1} parent=0 // pred_check
    _
  $region43: #{name_generator_forward.1} parent=0 // pred_check_branch
    %2188 = sbr.rel (0) target = $region45
  $region44: #{name_generator_forward.1} parent=0 // pred_region
    _
  $region45: #{name_generator_forward.1} parent=0 // pred_fallthru
    _
  // Predicated region
  $region46: #{name_generator_forward.1} parent=0 // pred_check
    _
  $region47: #{name_generator_forward.1} parent=0 // pred_check_branch
    %2190 = sbr.rel (0) target = $region49
  $region48: #{name_generator_forward.1} parent=0 // pred_region
    _
  $region49: #{name_generator_forward.1} parent=0 // pred_fallthru
    _
  // Predicated region
  $region50: #{name_generator_forward.1} parent=0 // pred_check
    _
  $region51: #{name_generator_forward.1} parent=0 // pred_check_branch
    %2192 = sbr.rel (0) target = $region53
  $region52: #{name_generator_forward.1} parent=0 // pred_region
    _
  $region53: #{name_generator_forward.1} parent=0 // pred_fallthru
    _
  // Predicated region
  $region54: #{name_generator_forward.1} parent=0 // pred_check
    _
  $region55: #{name_generator_forward.1} parent=0 // pred_check_branch
    %2194 = sbr.rel (0) target = $region57
  $region56: #{name_generator_forward.1} parent=0 // pred_region
    _
  $region57: #{name_generator_forward.1} parent=0 // pred_fallthru
    _
  // Predicated region
  $region58: #{name_generator_forward.1} parent=0 // pred_check
    _
  $region59: #{name_generator_forward.1} parent=0 // pred_check_branch
    %2196 = sbr.rel (0) target = $region61
  $region60: #{name_generator_forward.1} parent=0 // pred_region
    _
  $region61: #{name_generator_forward.1} parent=0 // pred_fallthru
    _

</llo_original>
